<compile_context>
chip_gen: v7x
topology: tpu7x:2x2x1
jax: 0.10.0
libtpu: 0.0.40
codegen_flags: <defaults>
</compile_context>

<pallas_src>
import jax
import jax.numpy as jnp
from jax.experimental import pallas as pl
from jax.experimental.pallas import tpu as pltpu


# ----------------------------------------------------------------------------
# Kernel
# ----------------------------------------------------------------------------
def _sigmoid(x):
    # sigmoid(x) = 0.5 * (tanh(0.5 x) + 1): one EUP op instead of exp + divide,
    # shortening the serial per-step transcendental chain.
    return 0.5 * (jnp.tanh(0.5 * x) + 1.0)


def encoder_gru_kernel(tokens_ref, emb_ref, wih_ref, whh_ref, biasx_ref,
                       bhn_ref, h0_ref, out_ref, x_scratch, xg_scratch):
    """Fused encoder: embedding gather + input projection + GRU recurrence.

      tokens_ref : (T,)       int32  SMEM   token ids
      emb_ref    : (V, 1, H)  f32    VMEM   embedding table (leading-dim gather)
      wih_ref    : (H, 3H)    bf16   VMEM   packed input weights  (r, z, n)
      whh_ref    : (H, 3H)    bf16   VMEM   packed hidden weights (r, z, n)
      biasx_ref  : (1, 3H)    f32    VMEM   [b_ir+b_hr, b_iz+b_hz, b_in]
      bhn_ref    : (1, H)     f32    VMEM   b_hn (stays inside r * (...))
      h0_ref     : (1, H)     f32    VMEM   initial hidden state
      out_ref    : (T, H)     f32    VMEM   per-step hidden states (output)
      x_scratch  : (T, H)     f32    VMEM   gathered embeddings
      xg_scratch : (T, 3H)    f32    VMEM   precomputed input gates
    """
    T, H = out_ref.shape

    # --- 1) Embedding gather into a dense VMEM slab. ------------------------
    # Dynamic indexing only on the (untiled) leading vocab dim; the destination
    # row index t is static (loop is unrolled at trace time).
    for t in range(T):
        tok = tokens_ref[t]                       # scalar read from SMEM
        x_scratch[pl.ds(t, 1), :] = emb_ref[tok]  # (1, H) row gather

    # --- 2) Input projection for the whole sequence: one MXU matmul. --------
    # (T, H) x (H, 3H) bf16 -> f32, plus pre-summed r/z biases and b_in.
    xg_scratch[...] = (
        jnp.dot(x_scratch[...].astype(jnp.bfloat16), wih_ref[...],
                preferred_element_type=jnp.float32)
        + biasx_ref[...])

    # --- 3) Recurrence (PyTorch GRU semantics), fully unrolled. --------------
    #   r  = sigmoid(gi_r + gh_r)
    #   z  = sigmoid(gi_z + gh_z)
    #   n  = tanh   (gi_n + r * (gh_n + b_hn))
    #   h' = (1 - z) * n + z * h
    whh = whh_ref[...]                            # (H, 3H) bf16, hoisted
    bhn = bhn_ref[...]                            # (1, H)  f32, hoisted
    h = h0_ref[...]                               # (1, H)  f32, carried in vregs
    for t in range(T):
        xg = xg_scratch[pl.ds(t, 1), :]           # (1, 3H) precomputed gates
        gh = jnp.dot(h.astype(jnp.bfloat16), whh,
                     preferred_element_type=jnp.float32)   # (1, 3H)
        r = _sigmoid(xg[:, :H] + gh[:, :H])
        z = _sigmoid(xg[:, H:2 * H] + gh[:, H:2 * H])
        n = jnp.tanh(xg[:, 2 * H:] + r * (gh[:, 2 * H:] + bhn))
        h = (1.0 - z) * n + z * h                 # f32 blend (v5e-safe)
        out_ref[pl.ds(t, 1), :] = h               # VMEM row store; one HBM
                                                  # writeback DMA at kernel end


# ----------------------------------------------------------------------------
# Wrappers
# ----------------------------------------------------------------------------
def encoder_rnn_encode(tokens, hidden0, packed):
    """Run the encoder over a whole token sequence with ONE kernel launch.

    tokens : (T,) int32 token ids
    hidden0: (1, 1, H) f32 initial hidden
    returns (outputs (T, 1, H), final hidden (1, 1, H))
    """
    emb = packed["embedding_rows"]                # (V, 1, H) f32
    H = emb.shape[-1]
    T = int(tokens.shape[0])

    vmem = pl.BlockSpec(memory_space=pltpu.MemorySpace.VMEM)
    smem = pl.BlockSpec(memory_space=pltpu.MemorySpace.SMEM)

    outputs_2d = pl.pallas_call(
        encoder_gru_kernel,
        out_shape=jax.ShapeDtypeStruct((T, H), jnp.float32),
        in_specs=[smem, vmem, vmem, vmem, vmem, vmem, vmem],
        out_specs=vmem,
        scratch_shapes=[
            pltpu.VMEM((T, H), jnp.float32),       # gathered embeddings
            pltpu.VMEM((T, 3 * H), jnp.float32),   # precomputed input gates
        ],
    )(tokens.astype(jnp.int32),
      emb,
      packed["w_ih_packed"],
      packed["w_hh_packed"],
      packed["bias_x"],
      packed["b_hn"],
      hidden0.reshape(1, H).astype(jnp.float32))

    outputs = outputs_2d.reshape(T, 1, H)
    h_final = outputs_2d[T - 1].reshape(1, 1, H)
    return outputs, h_final


def encoder_rnn_forward(token, hidden, packed):
    """EncoderRNN.forward: single-step semantics of the PyTorch module.

    token : scalar int32, hidden: (1, 1, H). Returns (output, hidden),
    both (1, 1, H) (output == new hidden for a single GRU step).
    """
    H = packed["w_hh_packed"].shape[0]
    tokens = jnp.reshape(token, (1,)).astype(jnp.int32)
    outputs, h_final = encoder_rnn_encode(tokens, hidden, packed)
    out = outputs[0].reshape(1, 1, H)
    return out, h_final


# ----------------------------------------------------------------------------
# Parameters (PyTorch layout) and packing for the kernel
# ----------------------------------------------------------------------------
def init_params(key, input_size, hidden_size):
    """Synthetic params with PyTorch shapes: weight_*_l0 (3H, H), bias_* (3H,)."""
    k_emb, k_wih, k_whh, k_bih, k_bhh = jax.random.split(key, 5)
    H = hidden_size
    bound = 1.0 / jnp.sqrt(jnp.float32(H))
    return dict(
        embedding=jax.random.normal(k_emb, (input_size, H), jnp.float32),
        w_ih=jax.random.uniform(k_wih, (3 * H, H), jnp.float32, -bound, bound),
        w_hh=jax.random.uniform(k_whh, (3 * H, H), jnp.float32, -bound, bound),
        b_ih=jax.random.uniform(k_bih, (3 * H,), jnp.float32, -bound, bound),
        b_hh=jax.random.uniform(k_bhh, (3 * H,), jnp.float32, -bound, bound),
    )


def pack_params(raw):
    """Pack PyTorch-layout params into kernel-ready form.

    - weights transposed to (H, 3H) and cast to bf16 (gate order r, z, n)
    - r/z biases from b_ih and b_hh pre-summed into one (1, 3H) f32 vector
      (b_in kept there too); b_hn kept separate (needed inside r * (...))
    - embedding reshaped to (V, 1, H) so the in-kernel gather is a dynamic
      index on an untiled leading dim (no dynamic sublane slicing).
    """
    V, H = raw["embedding"].shape
    b_ih, b_hh = raw["b_ih"], raw["b_hh"]
    bias_x = jnp.concatenate([
        b_ih[:H] + b_hh[:H],            # r
        b_ih[H:2 * H] + b_hh[H:2 * H],  # z
        b_ih[2 * H:],                   # n (input part only)
    ]).reshape(1, 3 * H).astype(jnp.float32)
    return dict(
        embedding_rows=raw["embedding"].reshape(V, 1, H).astype(jnp.float32),
        w_ih_packed=raw["w_ih"].T.astype(jnp.bfloat16),   # (H, 3H)
        w_hh_packed=raw["w_hh"].T.astype(jnp.bfloat16),   # (H, 3H)
        bias_x=bias_x,
        b_hn=b_hh[2 * H:].reshape(1, H).astype(jnp.float32),
    )


# ----------------------------------------------------------------------------
# Pure-JAX reference (PyTorch GRU semantics) for verification
# ----------------------------------------------------------------------------
def encoder_rnn_reference(tokens, hidden0, raw, bf16_matmul=False):
    emb = raw["embedding"]
    H = emb.shape[1]
    Wih, Whh = raw["w_ih"], raw["w_hh"]
    bih = raw["b_ih"].reshape(1, 3 * H)
    bhh = raw["b_hh"].reshape(1, 3 * H)

    def dot(a, b):
        if bf16_matmul:
            return jnp.dot(a.astype(jnp.bfloat16), b.astype(jnp.bfloat16),
                           preferred_element_type=jnp.float32)
        return jnp.dot(a, b, preferred_element_type=jnp.float32)

    h = hidden0.reshape(1, H).astype(jnp.float32)
    outs = []
    for t in range(tokens.shape[0]):
        x = emb[tokens[t]].reshape(1, H)
        gi = dot(x, Wih.T) + bih
        gh = dot(h, Whh.T) + bhh
        r = jax.nn.sigmoid(gi[:, :H] + gh[:, :H])
        z = jax.nn.sigmoid(gi[:, H:2 * H] + gh[:, H:2 * H])
        n = jnp.tanh(gi[:, 2 * H:] + r * gh[:, 2 * H:])
        h = (1.0 - z) * n + z * h
        outs.append(h)
    outputs = jnp.stack(outs).reshape(-1, 1, H)
    return outputs, h.reshape(1, 1, H)


# ----------------------------------------------------------------------------
if __name__ == "__main__":
    INPUT_SIZE = 64      # vocab size
    HIDDEN_SIZE = 128    # lane-aligned hidden width (gate slices stay aligned)
    SEQ_LEN = 8

    key = jax.random.PRNGKey(0)
    k_params, k_tok = jax.random.split(key)
    raw = init_params(k_params, INPUT_SIZE, HIDDEN_SIZE)
    packed = pack_params(raw)

    tokens = jax.random.randint(k_tok, (SEQ_LEN,), 0, INPUT_SIZE, dtype=jnp.int32)
    hidden0 = jnp.zeros((1, 1, HIDDEN_SIZE), jnp.float32)   # init_hidden()

    # Full-sequence encode (single fused pallas_call).
    outs, hid = encoder_rnn_encode(tokens, hidden0, packed)
    outs = jax.block_until_ready(outs)
    hid = jax.block_until_ready(hid)
    assert outs.shape == (SEQ_LEN, 1, HIDDEN_SIZE)
    assert hid.shape == (1, 1, HIDDEN_SIZE)

    # Check against exact f32 PyTorch semantics (loose: weights are bf16 on MXU).
    ref_outs, ref_hid = encoder_rnn_reference(tokens, hidden0, raw)
    assert jnp.allclose(outs, ref_outs, atol=2e-2, rtol=2e-2)
    assert jnp.allclose(hid, ref_hid, atol=2e-2, rtol=2e-2)

    # Check against a bf16-matmul-matched reference (tight).
    ref_outs_bf, ref_hid_bf = encoder_rnn_reference(tokens, hidden0, raw,
                                                    bf16_matmul=True)
    assert jnp.allclose(outs, ref_outs_bf, atol=2e-3, rtol=2e-3)
    assert jnp.allclose(hid, ref_hid_bf, atol=2e-3, rtol=2e-3)

    # Single-step path matching the module's forward(input, hidden) signature.
    out1, hid1 = encoder_rnn_forward(tokens[0], hidden0, packed)
    out1 = jax.block_until_ready(out1)
    hid1 = jax.block_until_ready(hid1)
    assert out1.shape == (1, 1, HIDDEN_SIZE) and hid1.shape == (1, 1, HIDDEN_SIZE)
    assert jnp.allclose(out1, ref_outs[0].reshape(1, 1, HIDDEN_SIZE),
                        atol=2e-2, rtol=2e-2)
    assert jnp.allclose(out1, hid1)

    print("KERNEL_OK")
</pallas_src>

<mosaic_0001>
module attributes {stable_mosaic.version = 11 : i64} {
  func.func @encoder_gru_kernel(%arg0: memref<8xi32, #tpu.memory_space<smem>>, %arg1: memref<64x1x128xf32, #tpu.memory_space<vmem>>, %arg2: memref<128x384xbf16, #tpu.memory_space<vmem>>, %arg3: memref<128x384xbf16, #tpu.memory_space<vmem>>, %arg4: memref<1x384xf32, #tpu.memory_space<vmem>>, %arg5: memref<1x128xf32, #tpu.memory_space<vmem>>, %arg6: memref<1x128xf32, #tpu.memory_space<vmem>>, %arg7: memref<8x128xf32, #tpu.memory_space<vmem>>, %arg8: memref<8x128xf32, #tpu.memory_space<vmem>>, %arg9: memref<8x384xf32, #tpu.memory_space<vmem>>) attributes {dimension_semantics = [], scalar_prefetch = 0 : i64, scratch_operands = 2 : i64, tpu.core_type = #tpu.core_type<tc>} {
    %c0 = arith.constant 0 : index
    %0 = memref.load %arg0[%c0] : memref<8xi32, #tpu.memory_space<smem>>
    %1 = arith.index_cast %0 : i32 to index
    %c0_0 = arith.constant 0 : index
    %c0_1 = arith.constant 0 : index
    %2 = vector.load %arg1[%1, %c0_0, %c0_1] : memref<64x1x128xf32, #tpu.memory_space<vmem>>, vector<1x1x128xf32>
    %3 = vector.shape_cast %2 : vector<1x1x128xf32> to vector<1x128xf32>
    %c0_2 = arith.constant 0 : index
    %c0_3 = arith.constant 0 : index
    %4 = vector.load %arg8[%c0_2, %c0_3] : memref<8x128xf32, #tpu.memory_space<vmem>>, vector<1x128xf32>
    tpu.vector_store %arg8[%c0_2, %c0_3], %3 {strides = array<i32>} : memref<8x128xf32, #tpu.memory_space<vmem>>, vector<1x128xf32>,
    %c1 = arith.constant 1 : index
    %5 = memref.load %arg0[%c1] : memref<8xi32, #tpu.memory_space<smem>>
    %6 = arith.index_cast %5 : i32 to index
    %c0_4 = arith.constant 0 : index
    %c0_5 = arith.constant 0 : index
    %7 = vector.load %arg1[%6, %c0_4, %c0_5] : memref<64x1x128xf32, #tpu.memory_space<vmem>>, vector<1x1x128xf32>
    %8 = vector.shape_cast %7 : vector<1x1x128xf32> to vector<1x128xf32>
    %c1_6 = arith.constant 1 : index
    %c0_7 = arith.constant 0 : index
    %9 = vector.load %arg8[%c1_6, %c0_7] : memref<8x128xf32, #tpu.memory_space<vmem>>, vector<1x128xf32>
    tpu.vector_store %arg8[%c1_6, %c0_7], %8 {strides = array<i32>} : memref<8x128xf32, #tpu.memory_space<vmem>>, vector<1x128xf32>,
    %c2 = arith.constant 2 : index
    %10 = memref.load %arg0[%c2] : memref<8xi32, #tpu.memory_space<smem>>
    %11 = arith.index_cast %10 : i32 to index
    %c0_8 = arith.constant 0 : index
    %c0_9 = arith.constant 0 : index
    %12 = vector.load %arg1[%11, %c0_8, %c0_9] : memref<64x1x128xf32, #tpu.memory_space<vmem>>, vector<1x1x128xf32>
    %13 = vector.shape_cast %12 : vector<1x1x128xf32> to vector<1x128xf32>
    %c2_10 = arith.constant 2 : index
    %c0_11 = arith.constant 0 : index
    %14 = vector.load %arg8[%c2_10, %c0_11] : memref<8x128xf32, #tpu.memory_space<vmem>>, vector<1x128xf32>
    tpu.vector_store %arg8[%c2_10, %c0_11], %13 {strides = array<i32>} : memref<8x128xf32, #tpu.memory_space<vmem>>, vector<1x128xf32>,
    %c3 = arith.constant 3 : index
    %15 = memref.load %arg0[%c3] : memref<8xi32, #tpu.memory_space<smem>>
    %16 = arith.index_cast %15 : i32 to index
    %c0_12 = arith.constant 0 : index
    %c0_13 = arith.constant 0 : index
    %17 = vector.load %arg1[%16, %c0_12, %c0_13] : memref<64x1x128xf32, #tpu.memory_space<vmem>>, vector<1x1x128xf32>
    %18 = vector.shape_cast %17 : vector<1x1x128xf32> to vector<1x128xf32>
    %c3_14 = arith.constant 3 : index
    %c0_15 = arith.constant 0 : index
    %19 = vector.load %arg8[%c3_14, %c0_15] : memref<8x128xf32, #tpu.memory_space<vmem>>, vector<1x128xf32>
    tpu.vector_store %arg8[%c3_14, %c0_15], %18 {strides = array<i32>} : memref<8x128xf32, #tpu.memory_space<vmem>>, vector<1x128xf32>,
    %c4 = arith.constant 4 : index
    %20 = memref.load %arg0[%c4] : memref<8xi32, #tpu.memory_space<smem>>
    %21 = arith.index_cast %20 : i32 to index
    %c0_16 = arith.constant 0 : index
    %c0_17 = arith.constant 0 : index
    %22 = vector.load %arg1[%21, %c0_16, %c0_17] : memref<64x1x128xf32, #tpu.memory_space<vmem>>, vector<1x1x128xf32>
    %23 = vector.shape_cast %22 : vector<1x1x128xf32> to vector<1x128xf32>
    %c4_18 = arith.constant 4 : index
    %c0_19 = arith.constant 0 : index
    %24 = vector.load %arg8[%c4_18, %c0_19] : memref<8x128xf32, #tpu.memory_space<vmem>>, vector<1x128xf32>
    tpu.vector_store %arg8[%c4_18, %c0_19], %23 {strides = array<i32>} : memref<8x128xf32, #tpu.memory_space<vmem>>, vector<1x128xf32>,
    %c5 = arith.constant 5 : index
    %25 = memref.load %arg0[%c5] : memref<8xi32, #tpu.memory_space<smem>>
    %26 = arith.index_cast %25 : i32 to index
    %c0_20 = arith.constant 0 : index
    %c0_21 = arith.constant 0 : index
    %27 = vector.load %arg1[%26, %c0_20, %c0_21] : memref<64x1x128xf32, #tpu.memory_space<vmem>>, vector<1x1x128xf32>
    %28 = vector.shape_cast %27 : vector<1x1x128xf32> to vector<1x128xf32>
    %c5_22 = arith.constant 5 : index
    %c0_23 = arith.constant 0 : index
    %29 = vector.load %arg8[%c5_22, %c0_23] : memref<8x128xf32, #tpu.memory_space<vmem>>, vector<1x128xf32>
    tpu.vector_store %arg8[%c5_22, %c0_23], %28 {strides = array<i32>} : memref<8x128xf32, #tpu.memory_space<vmem>>, vector<1x128xf32>,
    %c6 = arith.constant 6 : index
    %30 = memref.load %arg0[%c6] : memref<8xi32, #tpu.memory_space<smem>>
    %31 = arith.index_cast %30 : i32 to index
    %c0_24 = arith.constant 0 : index
    %c0_25 = arith.constant 0 : index
    %32 = vector.load %arg1[%31, %c0_24, %c0_25] : memref<64x1x128xf32, #tpu.memory_space<vmem>>, vector<1x1x128xf32>
    %33 = vector.shape_cast %32 : vector<1x1x128xf32> to vector<1x128xf32>
    %c6_26 = arith.constant 6 : index
    %c0_27 = arith.constant 0 : index
    %34 = vector.load %arg8[%c6_26, %c0_27] : memref<8x128xf32, #tpu.memory_space<vmem>>, vector<1x128xf32>
    tpu.vector_store %arg8[%c6_26, %c0_27], %33 {strides = array<i32>} : memref<8x128xf32, #tpu.memory_space<vmem>>, vector<1x128xf32>,
    %c7 = arith.constant 7 : index
    %35 = memref.load %arg0[%c7] : memref<8xi32, #tpu.memory_space<smem>>
    %36 = arith.index_cast %35 : i32 to index
    %c0_28 = arith.constant 0 : index
    %c0_29 = arith.constant 0 : index
    %37 = vector.load %arg1[%36, %c0_28, %c0_29] : memref<64x1x128xf32, #tpu.memory_space<vmem>>, vector<1x1x128xf32>
    %38 = vector.shape_cast %37 : vector<1x1x128xf32> to vector<1x128xf32>
    %c7_30 = arith.constant 7 : index
    %c0_31 = arith.constant 0 : index
    %39 = vector.load %arg8[%c7_30, %c0_31] : memref<8x128xf32, #tpu.memory_space<vmem>>, vector<1x128xf32>
    tpu.vector_store %arg8[%c7_30, %c0_31], %38 {strides = array<i32>} : memref<8x128xf32, #tpu.memory_space<vmem>>, vector<1x128xf32>,
    %c0_32 = arith.constant 0 : index
    %c0_33 = arith.constant 0 : index
    %40 = vector.load %arg8[%c0_32, %c0_33] : memref<8x128xf32, #tpu.memory_space<vmem>>, vector<8x128xf32>
    %41 = arith.truncf %40 : vector<8x128xf32> to vector<8x128xbf16>
    %c0_34 = arith.constant 0 : index
    %c0_35 = arith.constant 0 : index
    %42 = vector.load %arg2[%c0_34, %c0_35] : memref<128x384xbf16, #tpu.memory_space<vmem>>, vector<128x384xbf16>
    %cst = arith.constant dense<0.000000e+00> : vector<8x384xf32>
    %43 = tpu.matmul %41, %42, %cst {dimension_numbers = #tpu.dot_dimension_numbers<[1], [0], [0], [1], [0, 0, 1, 1], [], []>} : vector<8x128xbf16>, vector<128x384xbf16>, vector<8x384xf32> -> vector<8x384xf32>
    %c0_36 = arith.constant 0 : index
    %c0_37 = arith.constant 0 : index
    %44 = vector.load %arg4[%c0_36, %c0_37] : memref<1x384xf32, #tpu.memory_space<vmem>>, vector<1x384xf32>
    %45 = vector.broadcast %44 : vector<1x384xf32> to vector<8x384xf32>
    %46 = arith.addf %43, %45 : vector<8x384xf32>
    %c0_38 = arith.constant 0 : index
    %c0_39 = arith.constant 0 : index
    %47 = vector.load %arg9[%c0_38, %c0_39] : memref<8x384xf32, #tpu.memory_space<vmem>>, vector<8x384xf32>
    tpu.vector_store %arg9[%c0_38, %c0_39], %46 {strides = array<i32>} : memref<8x384xf32, #tpu.memory_space<vmem>>, vector<8x384xf32>,
    %c0_40 = arith.constant 0 : index
    %c0_41 = arith.constant 0 : index
    %48 = vector.load %arg3[%c0_40, %c0_41] : memref<128x384xbf16, #tpu.memory_space<vmem>>, vector<128x384xbf16>
    %c0_42 = arith.constant 0 : index
    %c0_43 = arith.constant 0 : index
    %49 = vector.load %arg5[%c0_42, %c0_43] : memref<1x128xf32, #tpu.memory_space<vmem>>, vector<1x128xf32>
    %c0_44 = arith.constant 0 : index
    %c0_45 = arith.constant 0 : index
    %50 = vector.load %arg6[%c0_44, %c0_45] : memref<1x128xf32, #tpu.memory_space<vmem>>, vector<1x128xf32>
    %c0_46 = arith.constant 0 : index
    %c0_47 = arith.constant 0 : index
    %51 = vector.load %arg9[%c0_46, %c0_47] : memref<8x384xf32, #tpu.memory_space<vmem>>, vector<1x384xf32>
    %52 = arith.truncf %50 : vector<1x128xf32> to vector<1x128xbf16>
    %cst_48 = arith.constant dense<0.000000e+00> : vector<1x384xf32>
    %53 = tpu.matmul %52, %48, %cst_48 {dimension_numbers = #tpu.dot_dimension_numbers<[1], [0], [0], [1], [0, 0, 1, 1], [], []>} : vector<1x128xbf16>, vector<128x384xbf16>, vector<1x384xf32> -> vector<1x384xf32>
    %54 = vector.extract_strided_slice %51 {offsets = [0, 0], sizes = [1, 128], strides = [1, 1]} : vector<1x384xf32> to vector<1x128xf32>
    %55 = vector.extract_strided_slice %53 {offsets = [0, 0], sizes = [1, 128], strides = [1, 1]} : vector<1x384xf32> to vector<1x128xf32>
    %56 = arith.addf %54, %55 : vector<1x128xf32>
    %cst_49 = arith.constant 5.000000e-01 : f32
    %57 = vector.broadcast %cst_49 : f32 to vector<1x128xf32>
    %58 = arith.mulf %57, %56 : vector<1x128xf32>
    %59 = math.tanh %58 : vector<1x128xf32>
    %cst_50 = arith.constant 1.000000e+00 : f32
    %60 = vector.broadcast %cst_50 : f32 to vector<1x128xf32>
    %61 = arith.addf %59, %60 : vector<1x128xf32>
    %cst_51 = arith.constant 5.000000e-01 : f32
    %62 = vector.broadcast %cst_51 : f32 to vector<1x128xf32>
    %63 = arith.mulf %62, %61 : vector<1x128xf32>
    %64 = vector.extract_strided_slice %51 {offsets = [0, 128], sizes = [1, 128], strides = [1, 1]} : vector<1x384xf32> to vector<1x128xf32>
    %65 = vector.extract_strided_slice %53 {offsets = [0, 128], sizes = [1, 128], strides = [1, 1]} : vector<1x384xf32> to vector<1x128xf32>
    %66 = arith.addf %64, %65 : vector<1x128xf32>
    %cst_52 = arith.constant 5.000000e-01 : f32
    %67 = vector.broadcast %cst_52 : f32 to vector<1x128xf32>
    %68 = arith.mulf %67, %66 : vector<1x128xf32>
    %69 = math.tanh %68 : vector<1x128xf32>
    %cst_53 = arith.constant 1.000000e+00 : f32
    %70 = vector.broadcast %cst_53 : f32 to vector<1x128xf32>
    %71 = arith.addf %69, %70 : vector<1x128xf32>
    %cst_54 = arith.constant 5.000000e-01 : f32
    %72 = vector.broadcast %cst_54 : f32 to vector<1x128xf32>
    %73 = arith.mulf %72, %71 : vector<1x128xf32>
    %74 = vector.extract_strided_slice %51 {offsets = [0, 256], sizes = [1, 128], strides = [1, 1]} : vector<1x384xf32> to vector<1x128xf32>
    %75 = vector.extract_strided_slice %53 {offsets = [0, 256], sizes = [1, 128], strides = [1, 1]} : vector<1x384xf32> to vector<1x128xf32>
    %76 = arith.addf %75, %49 : vector<1x128xf32>
    %77 = arith.mulf %63, %76 : vector<1x128xf32>
    %78 = arith.addf %74, %77 : vector<1x128xf32>
    %79 = math.tanh %78 : vector<1x128xf32>
    %cst_55 = arith.constant 1.000000e+00 : f32
    %80 = vector.broadcast %cst_55 : f32 to vector<1x128xf32>
    %81 = arith.subf %80, %73 : vector<1x128xf32>
    %82 = arith.mulf %81, %79 : vector<1x128xf32>
    %83 = arith.mulf %73, %50 : vector<1x128xf32>
    %84 = arith.addf %82, %83 : vector<1x128xf32>
    %c0_56 = arith.constant 0 : index
    %c0_57 = arith.constant 0 : index
    %85 = vector.load %arg7[%c0_56, %c0_57] : memref<8x128xf32, #tpu.memory_space<vmem>>, vector<1x128xf32>
    tpu.vector_store %arg7[%c0_56, %c0_57], %84 {strides = array<i32>} : memref<8x128xf32, #tpu.memory_space<vmem>>, vector<1x128xf32>,
    %c1_58 = arith.constant 1 : index
    %c0_59 = arith.constant 0 : index
    %86 = vector.load %arg9[%c1_58, %c0_59] : memref<8x384xf32, #tpu.memory_space<vmem>>, vector<1x384xf32>
    %87 = arith.truncf %84 : vector<1x128xf32> to vector<1x128xbf16>
    %cst_60 = arith.constant dense<0.000000e+00> : vector<1x384xf32>
    %88 = tpu.matmul %87, %48, %cst_60 {dimension_numbers = #tpu.dot_dimension_numbers<[1], [0], [0], [1], [0, 0, 1, 1], [], []>} : vector<1x128xbf16>, vector<128x384xbf16>, vector<1x384xf32> -> vector<1x384xf32>
    %89 = vector.extract_strided_slice %86 {offsets = [0, 0], sizes = [1, 128], strides = [1, 1]} : vector<1x384xf32> to vector<1x128xf32>
    %90 = vector.extract_strided_slice %88 {offsets = [0, 0], sizes = [1, 128], strides = [1, 1]} : vector<1x384xf32> to vector<1x128xf32>
    %91 = arith.addf %89, %90 : vector<1x128xf32>
    %cst_61 = arith.constant 5.000000e-01 : f32
    %92 = vector.broadcast %cst_61 : f32 to vector<1x128xf32>
    %93 = arith.mulf %92, %91 : vector<1x128xf32>
    %94 = math.tanh %93 : vector<1x128xf32>
    %cst_62 = arith.constant 1.000000e+00 : f32
    %95 = vector.broadcast %cst_62 : f32 to vector<1x128xf32>
    %96 = arith.addf %94, %95 : vector<1x128xf32>
    %cst_63 = arith.constant 5.000000e-01 : f32
    %97 = vector.broadcast %cst_63 : f32 to vector<1x128xf32>
    %98 = arith.mulf %97, %96 : vector<1x128xf32>
    %99 = vector.extract_strided_slice %86 {offsets = [0, 128], sizes = [1, 128], strides = [1, 1]} : vector<1x384xf32> to vector<1x128xf32>
    %100 = vector.extract_strided_slice %88 {offsets = [0, 128], sizes = [1, 128], strides = [1, 1]} : vector<1x384xf32> to vector<1x128xf32>
    %101 = arith.addf %99, %100 : vector<1x128xf32>
    %cst_64 = arith.constant 5.000000e-01 : f32
    %102 = vector.broadcast %cst_64 : f32 to vector<1x128xf32>
    %103 = arith.mulf %102, %101 : vector<1x128xf32>
    %104 = math.tanh %103 : vector<1x128xf32>
    %cst_65 = arith.constant 1.000000e+00 : f32
    %105 = vector.broadcast %cst_65 : f32 to vector<1x128xf32>
    %106 = arith.addf %104, %105 : vector<1x128xf32>
    %cst_66 = arith.constant 5.000000e-01 : f32
    %107 = vector.broadcast %cst_66 : f32 to vector<1x128xf32>
    %108 = arith.mulf %107, %106 : vector<1x128xf32>
    %109 = vector.extract_strided_slice %86 {offsets = [0, 256], sizes = [1, 128], strides = [1, 1]} : vector<1x384xf32> to vector<1x128xf32>
    %110 = vector.extract_strided_slice %88 {offsets = [0, 256], sizes = [1, 128], strides = [1, 1]} : vector<1x384xf32> to vector<1x128xf32>
    %111 = arith.addf %110, %49 : vector<1x128xf32>
    %112 = arith.mulf %98, %111 : vector<1x128xf32>
    %113 = arith.addf %109, %112 : vector<1x128xf32>
    %114 = math.tanh %113 : vector<1x128xf32>
    %cst_67 = arith.constant 1.000000e+00 : f32
    %115 = vector.broadcast %cst_67 : f32 to vector<1x128xf32>
    %116 = arith.subf %115, %108 : vector<1x128xf32>
    %117 = arith.mulf %116, %114 : vector<1x128xf32>
    %118 = arith.mulf %108, %84 : vector<1x128xf32>
    %119 = arith.addf %117, %118 : vector<1x128xf32>
    %c1_68 = arith.constant 1 : index
    %c0_69 = arith.constant 0 : index
    %120 = vector.load %arg7[%c1_68, %c0_69] : memref<8x128xf32, #tpu.memory_space<vmem>>, vector<1x128xf32>
    tpu.vector_store %arg7[%c1_68, %c0_69], %119 {strides = array<i32>} : memref<8x128xf32, #tpu.memory_space<vmem>>, vector<1x128xf32>,
    %c2_70 = arith.constant 2 : index
    %c0_71 = arith.constant 0 : index
    %121 = vector.load %arg9[%c2_70, %c0_71] : memref<8x384xf32, #tpu.memory_space<vmem>>, vector<1x384xf32>
    %122 = arith.truncf %119 : vector<1x128xf32> to vector<1x128xbf16>
    %cst_72 = arith.constant dense<0.000000e+00> : vector<1x384xf32>
    %123 = tpu.matmul %122, %48, %cst_72 {dimension_numbers = #tpu.dot_dimension_numbers<[1], [0], [0], [1], [0, 0, 1, 1], [], []>} : vector<1x128xbf16>, vector<128x384xbf16>, vector<1x384xf32> -> vector<1x384xf32>
    %124 = vector.extract_strided_slice %121 {offsets = [0, 0], sizes = [1, 128], strides = [1, 1]} : vector<1x384xf32> to vector<1x128xf32>
    %125 = vector.extract_strided_slice %123 {offsets = [0, 0], sizes = [1, 128], strides = [1, 1]} : vector<1x384xf32> to vector<1x128xf32>
    %126 = arith.addf %124, %125 : vector<1x128xf32>
    %cst_73 = arith.constant 5.000000e-01 : f32
    %127 = vector.broadcast %cst_73 : f32 to vector<1x128xf32>
    %128 = arith.mulf %127, %126 : vector<1x128xf32>
    %129 = math.tanh %128 : vector<1x128xf32>
    %cst_74 = arith.constant 1.000000e+00 : f32
    %130 = vector.broadcast %cst_74 : f32 to vector<1x128xf32>
    %131 = arith.addf %129, %130 : vector<1x128xf32>
    %cst_75 = arith.constant 5.000000e-01 : f32
    %132 = vector.broadcast %cst_75 : f32 to vector<1x128xf32>
    %133 = arith.mulf %132, %131 : vector<1x128xf32>
    %134 = vector.extract_strided_slice %121 {offsets = [0, 128], sizes = [1, 128], strides = [1, 1]} : vector<1x384xf32> to vector<1x128xf32>
    %135 = vector.extract_strided_slice %123 {offsets = [0, 128], sizes = [1, 128], strides = [1, 1]} : vector<1x384xf32> to vector<1x128xf32>
    %136 = arith.addf %134, %135 : vector<1x128xf32>
    %cst_76 = arith.constant 5.000000e-01 : f32
    %137 = vector.broadcast %cst_76 : f32 to vector<1x128xf32>
    %138 = arith.mulf %137, %136 : vector<1x128xf32>
    %139 = math.tanh %138 : vector<1x128xf32>
    %cst_77 = arith.constant 1.000000e+00 : f32
    %140 = vector.broadcast %cst_77 : f32 to vector<1x128xf32>
    %141 = arith.addf %139, %140 : vector<1x128xf32>
    %cst_78 = arith.constant 5.000000e-01 : f32
    %142 = vector.broadcast %cst_78 : f32 to vector<1x128xf32>
    %143 = arith.mulf %142, %141 : vector<1x128xf32>
    %144 = vector.extract_strided_slice %121 {offsets = [0, 256], sizes = [1, 128], strides = [1, 1]} : vector<1x384xf32> to vector<1x128xf32>
    %145 = vector.extract_strided_slice %123 {offsets = [0, 256], sizes = [1, 128], strides = [1, 1]} : vector<1x384xf32> to vector<1x128xf32>
    %146 = arith.addf %145, %49 : vector<1x128xf32>
    %147 = arith.mulf %133, %146 : vector<1x128xf32>
    %148 = arith.addf %144, %147 : vector<1x128xf32>
    %149 = math.tanh %148 : vector<1x128xf32>
    %cst_79 = arith.constant 1.000000e+00 : f32
    %150 = vector.broadcast %cst_79 : f32 to vector<1x128xf32>
    %151 = arith.subf %150, %143 : vector<1x128xf32>
    %152 = arith.mulf %151, %149 : vector<1x128xf32>
    %153 = arith.mulf %143, %119 : vector<1x128xf32>
    %154 = arith.addf %152, %153 : vector<1x128xf32>
    %c2_80 = arith.constant 2 : index
    %c0_81 = arith.constant 0 : index
    %155 = vector.load %arg7[%c2_80, %c0_81] : memref<8x128xf32, #tpu.memory_space<vmem>>, vector<1x128xf32>
    tpu.vector_store %arg7[%c2_80, %c0_81], %154 {strides = array<i32>} : memref<8x128xf32, #tpu.memory_space<vmem>>, vector<1x128xf32>,
    %c3_82 = arith.constant 3 : index
    %c0_83 = arith.constant 0 : index
    %156 = vector.load %arg9[%c3_82, %c0_83] : memref<8x384xf32, #tpu.memory_space<vmem>>, vector<1x384xf32>
    %157 = arith.truncf %154 : vector<1x128xf32> to vector<1x128xbf16>
    %cst_84 = arith.constant dense<0.000000e+00> : vector<1x384xf32>
    %158 = tpu.matmul %157, %48, %cst_84 {dimension_numbers = #tpu.dot_dimension_numbers<[1], [0], [0], [1], [0, 0, 1, 1], [], []>} : vector<1x128xbf16>, vector<128x384xbf16>, vector<1x384xf32> -> vector<1x384xf32>
    %159 = vector.extract_strided_slice %156 {offsets = [0, 0], sizes = [1, 128], strides = [1, 1]} : vector<1x384xf32> to vector<1x128xf32>
    %160 = vector.extract_strided_slice %158 {offsets = [0, 0], sizes = [1, 128], strides = [1, 1]} : vector<1x384xf32> to vector<1x128xf32>
    %161 = arith.addf %159, %160 : vector<1x128xf32>
    %cst_85 = arith.constant 5.000000e-01 : f32
    %162 = vector.broadcast %cst_85 : f32 to vector<1x128xf32>
    %163 = arith.mulf %162, %161 : vector<1x128xf32>
    %164 = math.tanh %163 : vector<1x128xf32>
    %cst_86 = arith.constant 1.000000e+00 : f32
    %165 = vector.broadcast %cst_86 : f32 to vector<1x128xf32>
    %166 = arith.addf %164, %165 : vector<1x128xf32>
    %cst_87 = arith.constant 5.000000e-01 : f32
    %167 = vector.broadcast %cst_87 : f32 to vector<1x128xf32>
    %168 = arith.mulf %167, %166 : vector<1x128xf32>
    %169 = vector.extract_strided_slice %156 {offsets = [0, 128], sizes = [1, 128], strides = [1, 1]} : vector<1x384xf32> to vector<1x128xf32>
    %170 = vector.extract_strided_slice %158 {offsets = [0, 128], sizes = [1, 128], strides = [1, 1]} : vector<1x384xf32> to vector<1x128xf32>
    %171 = arith.addf %169, %170 : vector<1x128xf32>
    %cst_88 = arith.constant 5.000000e-01 : f32
    %172 = vector.broadcast %cst_88 : f32 to vector<1x128xf32>
    %173 = arith.mulf %172, %171 : vector<1x128xf32>
    %174 = math.tanh %173 : vector<1x128xf32>
    %cst_89 = arith.constant 1.000000e+00 : f32
    %175 = vector.broadcast %cst_89 : f32 to vector<1x128xf32>
    %176 = arith.addf %174, %175 : vector<1x128xf32>
    %cst_90 = arith.constant 5.000000e-01 : f32
    %177 = vector.broadcast %cst_90 : f32 to vector<1x128xf32>
    %178 = arith.mulf %177, %176 : vector<1x128xf32>
    %179 = vector.extract_strided_slice %156 {offsets = [0, 256], sizes = [1, 128], strides = [1, 1]} : vector<1x384xf32> to vector<1x128xf32>
    %180 = vector.extract_strided_slice %158 {offsets = [0, 256], sizes = [1, 128], strides = [1, 1]} : vector<1x384xf32> to vector<1x128xf32>
    %181 = arith.addf %180, %49 : vector<1x128xf32>
    %182 = arith.mulf %168, %181 : vector<1x128xf32>
    %183 = arith.addf %179, %182 : vector<1x128xf32>
    %184 = math.tanh %183 : vector<1x128xf32>
    %cst_91 = arith.constant 1.000000e+00 : f32
    %185 = vector.broadcast %cst_91 : f32 to vector<1x128xf32>
    %186 = arith.subf %185, %178 : vector<1x128xf32>
    %187 = arith.mulf %186, %184 : vector<1x128xf32>
    %188 = arith.mulf %178, %154 : vector<1x128xf32>
    %189 = arith.addf %187, %188 : vector<1x128xf32>
    %c3_92 = arith.constant 3 : index
    %c0_93 = arith.constant 0 : index
    %190 = vector.load %arg7[%c3_92, %c0_93] : memref<8x128xf32, #tpu.memory_space<vmem>>, vector<1x128xf32>
    tpu.vector_store %arg7[%c3_92, %c0_93], %189 {strides = array<i32>} : memref<8x128xf32, #tpu.memory_space<vmem>>, vector<1x128xf32>,
    %c4_94 = arith.constant 4 : index
    %c0_95 = arith.constant 0 : index
    %191 = vector.load %arg9[%c4_94, %c0_95] : memref<8x384xf32, #tpu.memory_space<vmem>>, vector<1x384xf32>
    %192 = arith.truncf %189 : vector<1x128xf32> to vector<1x128xbf16>
    %cst_96 = arith.constant dense<0.000000e+00> : vector<1x384xf32>
    %193 = tpu.matmul %192, %48, %cst_96 {dimension_numbers = #tpu.dot_dimension_numbers<[1], [0], [0], [1], [0, 0, 1, 1], [], []>} : vector<1x128xbf16>, vector<128x384xbf16>, vector<1x384xf32> -> vector<1x384xf32>
    %194 = vector.extract_strided_slice %191 {offsets = [0, 0], sizes = [1, 128], strides = [1, 1]} : vector<1x384xf32> to vector<1x128xf32>
    %195 = vector.extract_strided_slice %193 {offsets = [0, 0], sizes = [1, 128], strides = [1, 1]} : vector<1x384xf32> to vector<1x128xf32>
    %196 = arith.addf %194, %195 : vector<1x128xf32>
    %cst_97 = arith.constant 5.000000e-01 : f32
    %197 = vector.broadcast %cst_97 : f32 to vector<1x128xf32>
    %198 = arith.mulf %197, %196 : vector<1x128xf32>
    %199 = math.tanh %198 : vector<1x128xf32>
    %cst_98 = arith.constant 1.000000e+00 : f32
    %200 = vector.broadcast %cst_98 : f32 to vector<1x128xf32>
    %201 = arith.addf %199, %200 : vector<1x128xf32>
    %cst_99 = arith.constant 5.000000e-01 : f32
    %202 = vector.broadcast %cst_99 : f32 to vector<1x128xf32>
    %203 = arith.mulf %202, %201 : vector<1x128xf32>
    %204 = vector.extract_strided_slice %191 {offsets = [0, 128], sizes = [1, 128], strides = [1, 1]} : vector<1x384xf32> to vector<1x128xf32>
    %205 = vector.extract_strided_slice %193 {offsets = [0, 128], sizes = [1, 128], strides = [1, 1]} : vector<1x384xf32> to vector<1x128xf32>
    %206 = arith.addf %204, %205 : vector<1x128xf32>
    %cst_100 = arith.constant 5.000000e-01 : f32
    %207 = vector.broadcast %cst_100 : f32 to vector<1x128xf32>
    %208 = arith.mulf %207, %206 : vector<1x128xf32>
    %209 = math.tanh %208 : vector<1x128xf32>
    %cst_101 = arith.constant 1.000000e+00 : f32
    %210 = vector.broadcast %cst_101 : f32 to vector<1x128xf32>
    %211 = arith.addf %209, %210 : vector<1x128xf32>
    %cst_102 = arith.constant 5.000000e-01 : f32
    %212 = vector.broadcast %cst_102 : f32 to vector<1x128xf32>
    %213 = arith.mulf %212, %211 : vector<1x128xf32>
    %214 = vector.extract_strided_slice %191 {offsets = [0, 256], sizes = [1, 128], strides = [1, 1]} : vector<1x384xf32> to vector<1x128xf32>
    %215 = vector.extract_strided_slice %193 {offsets = [0, 256], sizes = [1, 128], strides = [1, 1]} : vector<1x384xf32> to vector<1x128xf32>
    %216 = arith.addf %215, %49 : vector<1x128xf32>
    %217 = arith.mulf %203, %216 : vector<1x128xf32>
    %218 = arith.addf %214, %217 : vector<1x128xf32>
    %219 = math.tanh %218 : vector<1x128xf32>
    %cst_103 = arith.constant 1.000000e+00 : f32
    %220 = vector.broadcast %cst_103 : f32 to vector<1x128xf32>
    %221 = arith.subf %220, %213 : vector<1x128xf32>
    %222 = arith.mulf %221, %219 : vector<1x128xf32>
    %223 = arith.mulf %213, %189 : vector<1x128xf32>
    %224 = arith.addf %222, %223 : vector<1x128xf32>
    %c4_104 = arith.constant 4 : index
    %c0_105 = arith.constant 0 : index
    %225 = vector.load %arg7[%c4_104, %c0_105] : memref<8x128xf32, #tpu.memory_space<vmem>>, vector<1x128xf32>
    tpu.vector_store %arg7[%c4_104, %c0_105], %224 {strides = array<i32>} : memref<8x128xf32, #tpu.memory_space<vmem>>, vector<1x128xf32>,
    %c5_106 = arith.constant 5 : index
    %c0_107 = arith.constant 0 : index
    %226 = vector.load %arg9[%c5_106, %c0_107] : memref<8x384xf32, #tpu.memory_space<vmem>>, vector<1x384xf32>
    %227 = arith.truncf %224 : vector<1x128xf32> to vector<1x128xbf16>
    %cst_108 = arith.constant dense<0.000000e+00> : vector<1x384xf32>
    %228 = tpu.matmul %227, %48, %cst_108 {dimension_numbers = #tpu.dot_dimension_numbers<[1], [0], [0], [1], [0, 0, 1, 1], [], []>} : vector<1x128xbf16>, vector<128x384xbf16>, vector<1x384xf32> -> vector<1x384xf32>
    %229 = vector.extract_strided_slice %226 {offsets = [0, 0], sizes = [1, 128], strides = [1, 1]} : vector<1x384xf32> to vector<1x128xf32>
    %230 = vector.extract_strided_slice %228 {offsets = [0, 0], sizes = [1, 128], strides = [1, 1]} : vector<1x384xf32> to vector<1x128xf32>
    %231 = arith.addf %229, %230 : vector<1x128xf32>
    %cst_109 = arith.constant 5.000000e-01 : f32
    %232 = vector.broadcast %cst_109 : f32 to vector<1x128xf32>
    %233 = arith.mulf %232, %231 : vector<1x128xf32>
    %234 = math.tanh %233 : vector<1x128xf32>
    %cst_110 = arith.constant 1.000000e+00 : f32
    %235 = vector.broadcast %cst_110 : f32 to vector<1x128xf32>
    %236 = arith.addf %234, %235 : vector<1x128xf32>
    %cst_111 = arith.constant 5.000000e-01 : f32
    %237 = vector.broadcast %cst_111 : f32 to vector<1x128xf32>
    %238 = arith.mulf %237, %236 : vector<1x128xf32>
    %239 = vector.extract_strided_slice %226 {offsets = [0, 128], sizes = [1, 128], strides = [1, 1]} : vector<1x384xf32> to vector<1x128xf32>
    %240 = vector.extract_strided_slice %228 {offsets = [0, 128], sizes = [1, 128], strides = [1, 1]} : vector<1x384xf32> to vector<1x128xf32>
    %241 = arith.addf %239, %240 : vector<1x128xf32>
    %cst_112 = arith.constant 5.000000e-01 : f32
    %242 = vector.broadcast %cst_112 : f32 to vector<1x128xf32>
    %243 = arith.mulf %242, %241 : vector<1x128xf32>
    %244 = math.tanh %243 : vector<1x128xf32>
    %cst_113 = arith.constant 1.000000e+00 : f32
    %245 = vector.broadcast %cst_113 : f32 to vector<1x128xf32>
    %246 = arith.addf %244, %245 : vector<1x128xf32>
    %cst_114 = arith.constant 5.000000e-01 : f32
    %247 = vector.broadcast %cst_114 : f32 to vector<1x128xf32>
    %248 = arith.mulf %247, %246 : vector<1x128xf32>
    %249 = vector.extract_strided_slice %226 {offsets = [0, 256], sizes = [1, 128], strides = [1, 1]} : vector<1x384xf32> to vector<1x128xf32>
    %250 = vector.extract_strided_slice %228 {offsets = [0, 256], sizes = [1, 128], strides = [1, 1]} : vector<1x384xf32> to vector<1x128xf32>
    %251 = arith.addf %250, %49 : vector<1x128xf32>
    %252 = arith.mulf %238, %251 : vector<1x128xf32>
    %253 = arith.addf %249, %252 : vector<1x128xf32>
    %254 = math.tanh %253 : vector<1x128xf32>
    %cst_115 = arith.constant 1.000000e+00 : f32
    %255 = vector.broadcast %cst_115 : f32 to vector<1x128xf32>
    %256 = arith.subf %255, %248 : vector<1x128xf32>
    %257 = arith.mulf %256, %254 : vector<1x128xf32>
    %258 = arith.mulf %248, %224 : vector<1x128xf32>
    %259 = arith.addf %257, %258 : vector<1x128xf32>
    %c5_116 = arith.constant 5 : index
    %c0_117 = arith.constant 0 : index
    %260 = vector.load %arg7[%c5_116, %c0_117] : memref<8x128xf32, #tpu.memory_space<vmem>>, vector<1x128xf32>
    tpu.vector_store %arg7[%c5_116, %c0_117], %259 {strides = array<i32>} : memref<8x128xf32, #tpu.memory_space<vmem>>, vector<1x128xf32>,
    %c6_118 = arith.constant 6 : index
    %c0_119 = arith.constant 0 : index
    %261 = vector.load %arg9[%c6_118, %c0_119] : memref<8x384xf32, #tpu.memory_space<vmem>>, vector<1x384xf32>
    %262 = arith.truncf %259 : vector<1x128xf32> to vector<1x128xbf16>
    %cst_120 = arith.constant dense<0.000000e+00> : vector<1x384xf32>
    %263 = tpu.matmul %262, %48, %cst_120 {dimension_numbers = #tpu.dot_dimension_numbers<[1], [0], [0], [1], [0, 0, 1, 1], [], []>} : vector<1x128xbf16>, vector<128x384xbf16>, vector<1x384xf32> -> vector<1x384xf32>
    %264 = vector.extract_strided_slice %261 {offsets = [0, 0], sizes = [1, 128], strides = [1, 1]} : vector<1x384xf32> to vector<1x128xf32>
    %265 = vector.extract_strided_slice %263 {offsets = [0, 0], sizes = [1, 128], strides = [1, 1]} : vector<1x384xf32> to vector<1x128xf32>
    %266 = arith.addf %264, %265 : vector<1x128xf32>
    %cst_121 = arith.constant 5.000000e-01 : f32
    %267 = vector.broadcast %cst_121 : f32 to vector<1x128xf32>
    %268 = arith.mulf %267, %266 : vector<1x128xf32>
    %269 = math.tanh %268 : vector<1x128xf32>
    %cst_122 = arith.constant 1.000000e+00 : f32
    %270 = vector.broadcast %cst_122 : f32 to vector<1x128xf32>
    %271 = arith.addf %269, %270 : vector<1x128xf32>
    %cst_123 = arith.constant 5.000000e-01 : f32
    %272 = vector.broadcast %cst_123 : f32 to vector<1x128xf32>
    %273 = arith.mulf %272, %271 : vector<1x128xf32>
    %274 = vector.extract_strided_slice %261 {offsets = [0, 128], sizes = [1, 128], strides = [1, 1]} : vector<1x384xf32> to vector<1x128xf32>
    %275 = vector.extract_strided_slice %263 {offsets = [0, 128], sizes = [1, 128], strides = [1, 1]} : vector<1x384xf32> to vector<1x128xf32>
    %276 = arith.addf %274, %275 : vector<1x128xf32>
    %cst_124 = arith.constant 5.000000e-01 : f32
    %277 = vector.broadcast %cst_124 : f32 to vector<1x128xf32>
    %278 = arith.mulf %277, %276 : vector<1x128xf32>
    %279 = math.tanh %278 : vector<1x128xf32>
    %cst_125 = arith.constant 1.000000e+00 : f32
    %280 = vector.broadcast %cst_125 : f32 to vector<1x128xf32>
    %281 = arith.addf %279, %280 : vector<1x128xf32>
    %cst_126 = arith.constant 5.000000e-01 : f32
    %282 = vector.broadcast %cst_126 : f32 to vector<1x128xf32>
    %283 = arith.mulf %282, %281 : vector<1x128xf32>
    %284 = vector.extract_strided_slice %261 {offsets = [0, 256], sizes = [1, 128], strides = [1, 1]} : vector<1x384xf32> to vector<1x128xf32>
    %285 = vector.extract_strided_slice %263 {offsets = [0, 256], sizes = [1, 128], strides = [1, 1]} : vector<1x384xf32> to vector<1x128xf32>
    %286 = arith.addf %285, %49 : vector<1x128xf32>
    %287 = arith.mulf %273, %286 : vector<1x128xf32>
    %288 = arith.addf %284, %287 : vector<1x128xf32>
    %289 = math.tanh %288 : vector<1x128xf32>
    %cst_127 = arith.constant 1.000000e+00 : f32
    %290 = vector.broadcast %cst_127 : f32 to vector<1x128xf32>
    %291 = arith.subf %290, %283 : vector<1x128xf32>
    %292 = arith.mulf %291, %289 : vector<1x128xf32>
    %293 = arith.mulf %283, %259 : vector<1x128xf32>
    %294 = arith.addf %292, %293 : vector<1x128xf32>
    %c6_128 = arith.constant 6 : index
    %c0_129 = arith.constant 0 : index
    %295 = vector.load %arg7[%c6_128, %c0_129] : memref<8x128xf32, #tpu.memory_space<vmem>>, vector<1x128xf32>
    tpu.vector_store %arg7[%c6_128, %c0_129], %294 {strides = array<i32>} : memref<8x128xf32, #tpu.memory_space<vmem>>, vector<1x128xf32>,
    %c7_130 = arith.constant 7 : index
    %c0_131 = arith.constant 0 : index
    %296 = vector.load %arg9[%c7_130, %c0_131] : memref<8x384xf32, #tpu.memory_space<vmem>>, vector<1x384xf32>
    %297 = arith.truncf %294 : vector<1x128xf32> to vector<1x128xbf16>
    %cst_132 = arith.constant dense<0.000000e+00> : vector<1x384xf32>
    %298 = tpu.matmul %297, %48, %cst_132 {dimension_numbers = #tpu.dot_dimension_numbers<[1], [0], [0], [1], [0, 0, 1, 1], [], []>} : vector<1x128xbf16>, vector<128x384xbf16>, vector<1x384xf32> -> vector<1x384xf32>
    %299 = vector.extract_strided_slice %296 {offsets = [0, 0], sizes = [1, 128], strides = [1, 1]} : vector<1x384xf32> to vector<1x128xf32>
    %300 = vector.extract_strided_slice %298 {offsets = [0, 0], sizes = [1, 128], strides = [1, 1]} : vector<1x384xf32> to vector<1x128xf32>
    %301 = arith.addf %299, %300 : vector<1x128xf32>
    %cst_133 = arith.constant 5.000000e-01 : f32
    %302 = vector.broadcast %cst_133 : f32 to vector<1x128xf32>
    %303 = arith.mulf %302, %301 : vector<1x128xf32>
    %304 = math.tanh %303 : vector<1x128xf32>
    %cst_134 = arith.constant 1.000000e+00 : f32
    %305 = vector.broadcast %cst_134 : f32 to vector<1x128xf32>
    %306 = arith.addf %304, %305 : vector<1x128xf32>
    %cst_135 = arith.constant 5.000000e-01 : f32
    %307 = vector.broadcast %cst_135 : f32 to vector<1x128xf32>
    %308 = arith.mulf %307, %306 : vector<1x128xf32>
    %309 = vector.extract_strided_slice %296 {offsets = [0, 128], sizes = [1, 128], strides = [1, 1]} : vector<1x384xf32> to vector<1x128xf32>
    %310 = vector.extract_strided_slice %298 {offsets = [0, 128], sizes = [1, 128], strides = [1, 1]} : vector<1x384xf32> to vector<1x128xf32>
    %311 = arith.addf %309, %310 : vector<1x128xf32>
    %cst_136 = arith.constant 5.000000e-01 : f32
    %312 = vector.broadcast %cst_136 : f32 to vector<1x128xf32>
    %313 = arith.mulf %312, %311 : vector<1x128xf32>
    %314 = math.tanh %313 : vector<1x128xf32>
    %cst_137 = arith.constant 1.000000e+00 : f32
    %315 = vector.broadcast %cst_137 : f32 to vector<1x128xf32>
    %316 = arith.addf %314, %315 : vector<1x128xf32>
    %cst_138 = arith.constant 5.000000e-01 : f32
    %317 = vector.broadcast %cst_138 : f32 to vector<1x128xf32>
    %318 = arith.mulf %317, %316 : vector<1x128xf32>
    %319 = vector.extract_strided_slice %296 {offsets = [0, 256], sizes = [1, 128], strides = [1, 1]} : vector<1x384xf32> to vector<1x128xf32>
    %320 = vector.extract_strided_slice %298 {offsets = [0, 256], sizes = [1, 128], strides = [1, 1]} : vector<1x384xf32> to vector<1x128xf32>
    %321 = arith.addf %320, %49 : vector<1x128xf32>
    %322 = arith.mulf %308, %321 : vector<1x128xf32>
    %323 = arith.addf %319, %322 : vector<1x128xf32>
    %324 = math.tanh %323 : vector<1x128xf32>
    %cst_139 = arith.constant 1.000000e+00 : f32
    %325 = vector.broadcast %cst_139 : f32 to vector<1x128xf32>
    %326 = arith.subf %325, %318 : vector<1x128xf32>
    %327 = arith.mulf %326, %324 : vector<1x128xf32>
    %328 = arith.mulf %318, %294 : vector<1x128xf32>
    %329 = arith.addf %327, %328 : vector<1x128xf32>
    %c7_140 = arith.constant 7 : index
    %c0_141 = arith.constant 0 : index
    %330 = vector.load %arg7[%c7_140, %c0_141] : memref<8x128xf32, #tpu.memory_space<vmem>>, vector<1x128xf32>
    tpu.vector_store %arg7[%c7_140, %c0_141], %329 {strides = array<i32>} : memref<8x128xf32, #tpu.memory_space<vmem>>, vector<1x128xf32>,
    return
  }
}

</mosaic_0001>

<llo_original>
// kernel: tpu_custom_call.1
$region0: #{tpu_custom_call.1}
  #allocation0 [shape = 'u32[]', space=smem, size = 0x4, offset = 0x4, fixed_abs, tag = 'smem constant byte address 0x4 - core index']
  #allocation1 [shape = 'u32[144,128]{1,0:T(1,128)}', space=vmem, size = 0x12000, scoped, tag = 'internal scratch']
  #allocation2 [shape = 'f32[8,128]{1,0:T(8,128)}', space=vmem, size = 0x1000, scoped, tag = 'scratch operand']
  #allocation3 [shape = 'f32[8,384]{1,0:T(8,128)}', space=vmem, size = 0x3000, scoped, tag = 'scratch operand']
  %s0 = inlined_call_operand.hbm [shape: s32[8], index: 0, kind: input, shape index: {}]
  %s1 = inlined_call_operand.hbm [shape: f32[64,1,128], index: 1, kind: input, shape index: {}]
  %s2 = inlined_call_operand.hbm [shape: bf16[128,384], index: 2, kind: input, shape index: {}]
  %s3 = inlined_call_operand.hbm [shape: bf16[128,384], index: 3, kind: input, shape index: {}]
  %s4 = inlined_call_operand.vmem [shape: f32[1,384], index: 4, kind: input, shape index: {}]
  %s5 = inlined_call_operand.vmem [shape: f32[1,128], index: 5, kind: input, shape index: {}]
  %s6 = inlined_call_operand.vmem [shape: f32[1,128], index: 6, kind: input, shape index: {}]
  %s7 = inlined_call_operand.hbm [shape: f32[8,128], index: 7, kind: output, shape index: {}]
  %s8 = sld [smem:[#allocation0]]
  $region54: #{tpu_custom_call.1} parent=0
    _
  %s10 = ssub.s32 1, %s8
  %s11 = scalar_select 0, %s10, %s8
  $region1: #{tpu_custom_call.1} parent=0
    #allocation4 [shape = 'u8[512]{0}', space=smem, size = 0x200, scoped, tag = 'input window, operand 0, single buffered']
    #allocation5 [shape = 's32[1]{0}', space=sflag, size = 0x4, scoped, tag = 'scoped memory for tpu_custom_call.1']
    #allocation6 [shape = 's32[1]{0}', space=sflag, size = 0x4, scoped, tag = 'scoped memory for tpu_custom_call.1']
    #allocation7 [shape = 's32[1]{0}', space=sflag, size = 0x4, scoped, tag = 'scoped memory for tpu_custom_call.1']
    #allocation8 [shape = 'u8[32768]{0}', space=vmem, size = 0x8000, scoped, tag = 'input window, operand 1, single buffered']
    #allocation9 [shape = 'u8[98304]{0}', space=vmem, size = 0x18000, scoped, tag = 'input window, operand 2, single buffered']
    #allocation10 [shape = 's32[1]{0}', space=sflag, size = 0x4, scoped, tag = 'scoped memory for tpu_custom_call.1']
    #allocation11 [shape = 'u8[98304]{0}', space=vmem, size = 0x18000, scoped, tag = 'input window, operand 3, single buffered']
    #allocation12 [shape = 'u8[4096]{0}', space=vmem, size = 0x1000, scoped, tag = 'output window, operand 0, single buffered']
    %12 = vsyncpa [#allocation7], 0
    %13 = vsyncpa [#allocation5], 0
    %14 = vsyncpa [#allocation10], 0
    %15 = vsyncpa [#allocation6], 0
    // Predicated region
    $region2: #{tpu_custom_call.1} parent=1 // pred_check
      _
    $region3: #{tpu_custom_call.1} parent=1 // pred_check_branch
      %17 = sbr.rel (0) target = $region5
    $region4: #{tpu_custom_call.1} parent=1 // pred_region
      %s19 = ssub.s32 16, 16
      %20 = vsyncadd [#allocation7], %s19
      %23 = dma.hbm_to_smem %s0, 16, [#allocation4], [#allocation7]
    $region5: #{tpu_custom_call.1} parent=1 // pred_fallthru
      _
    // Predicated region
    $region6: #{tpu_custom_call.1} parent=1 // pred_check
      _
    $region7: #{tpu_custom_call.1} parent=1 // pred_check_branch
      %25 = sbr.rel (0) target = $region9
    $region8: #{tpu_custom_call.1} parent=1 // pred_region
      %s27 = ssub.s32 1024, 1024
      %28 = vsyncadd [#allocation5], %s27
      %s29 = sshll.u32 [#allocation8], 4
      %s30 = int_to_ptr.vmem [resolvable:$true] %s29
      %35 = dma.hbm_to_vmem [thread:$0]  %s1, 1024, %s30, [#allocation5], 16, 16, 1
    $region9: #{tpu_custom_call.1} parent=1 // pred_fallthru
      _
    // Predicated region
    $region10: #{tpu_custom_call.1} parent=1 // pred_check
      _
    $region11: #{tpu_custom_call.1} parent=1 // pred_check_branch
      %37 = sbr.rel (0) target = $region13
    $region12: #{tpu_custom_call.1} parent=1 // pred_region
      %s39 = ssub.s32 3072, 3072
      %40 = vsyncadd [#allocation10], %s39
      %s41 = sshll.u32 [#allocation9], 4
      %s42 = int_to_ptr.vmem [resolvable:$true] %s41
      %47 = dma.hbm_to_vmem [thread:$0]  %s2, 3072, %s42, [#allocation10], 192, 192, 12
    $region13: #{tpu_custom_call.1} parent=1 // pred_fallthru
      _
    // Predicated region
    $region14: #{tpu_custom_call.1} parent=1 // pred_check
      _
    $region15: #{tpu_custom_call.1} parent=1 // pred_check_branch
      %49 = sbr.rel (0) target = $region17
    $region16: #{tpu_custom_call.1} parent=1 // pred_region
      %s51 = ssub.s32 3072, 3072
      %52 = vsyncadd [#allocation10], %s51
      %s53 = sshll.u32 [#allocation11], 4
      %s54 = int_to_ptr.vmem [resolvable:$true] %s53
      %59 = dma.hbm_to_vmem [thread:$0]  %s3, 3072, %s54, [#allocation10], 192, 192, 12
    $region17: #{tpu_custom_call.1} parent=1 // pred_fallthru
      _
    // Predicated region
    $region18: #{tpu_custom_call.1} parent=1 // pred_check
      _
    $region19: #{tpu_custom_call.1} parent=1 // pred_check_branch
      %61 = sbr.rel (0) target = $region21
    $region20: #{tpu_custom_call.1} parent=1 // pred_region
      _
    $region21: #{tpu_custom_call.1} parent=1 // pred_fallthru
      _
    // Predicated region
    $region22: #{tpu_custom_call.1} parent=1 // pred_check
      _
    $region23: #{tpu_custom_call.1} parent=1 // pred_check_branch
      %63 = sbr.rel (0) target = $region25
    $region24: #{tpu_custom_call.1} parent=1 // pred_region
      _
    $region25: #{tpu_custom_call.1} parent=1 // pred_fallthru
      _
    // Predicated region
    $region26: #{tpu_custom_call.1} parent=1 // pred_check
      _
    $region27: #{tpu_custom_call.1} parent=1 // pred_check_branch
      %65 = sbr.rel (0) target = $region29
    $region28: #{tpu_custom_call.1} parent=1 // pred_region
      _
    $region29: #{tpu_custom_call.1} parent=1 // pred_fallthru
      _
    // Predicated region
    $region30: #{tpu_custom_call.1} parent=1 // pred_check
      _
    $region31: #{tpu_custom_call.1} parent=1 // pred_check_branch
      %67 = sbr.rel (0) target = $region33
    $region32: #{tpu_custom_call.1} parent=1 // pred_region
      %68 = dma.done [#allocation7], 16
    $region33: #{tpu_custom_call.1} parent=1 // pred_fallthru
      _
    // Predicated region
    $region34: #{tpu_custom_call.1} parent=1 // pred_check
      _
    $region35: #{tpu_custom_call.1} parent=1 // pred_check_branch
      %70 = sbr.rel (0) target = $region37
    $region36: #{tpu_custom_call.1} parent=1 // pred_region
      %71 = dma.done [#allocation5], 1024
    $region37: #{tpu_custom_call.1} parent=1 // pred_fallthru
      _
    // Predicated region
    $region38: #{tpu_custom_call.1} parent=1 // pred_check
      _
    $region39: #{tpu_custom_call.1} parent=1 // pred_check_branch
      %73 = sbr.rel (0) target = $region41
    $region40: #{tpu_custom_call.1} parent=1 // pred_region
      %74 = dma.done [#allocation10], 3072
    $region41: #{tpu_custom_call.1} parent=1 // pred_fallthru
      _
    // Predicated region
    $region42: #{tpu_custom_call.1} parent=1 // pred_check
      _
    $region43: #{tpu_custom_call.1} parent=1 // pred_check_branch
      %76 = sbr.rel (0) target = $region45
    $region44: #{tpu_custom_call.1} parent=1 // pred_region
      %77 = dma.done [#allocation10], 3072
    $region45: #{tpu_custom_call.1} parent=1 // pred_fallthru
      _
    %78 = sfence
    %s80 = sld [smem:[#allocation4]]
    %s81 = scalar_lea.vmem [#allocation8], %s80
    %v82 = vld [vmem:[%s81] sm:$0x1]
    %83 = vst [vmem:[#allocation2] sm:$0x1] %v82
    %s84 = sld [smem:[#allocation4 + $0x1]]
    %s85 = scalar_lea.vmem [#allocation8], %s84
    %v86 = vld [vmem:[%s85] sm:$0x1]
    %87 = vst [vmem:[#allocation2 + $0x1] sm:$0x1] %v86
    %s88 = sld [smem:[#allocation4 + $0x2]]
    %s89 = scalar_lea.vmem [#allocation8], %s88
    %v90 = vld [vmem:[%s89] sm:$0x1]
    %91 = vst [vmem:[#allocation2 + $0x2] sm:$0x1] %v90
    %s92 = sld [smem:[#allocation4 + $0x3]]
    %s93 = scalar_lea.vmem [#allocation8], %s92
    %v94 = vld [vmem:[%s93] sm:$0x1]
    %95 = vst [vmem:[#allocation2 + $0x3] sm:$0x1] %v94
    %s96 = sld [smem:[#allocation4 + $0x4]]
    %s97 = scalar_lea.vmem [#allocation8], %s96
    %v98 = vld [vmem:[%s97] sm:$0x1]
    %99 = vst [vmem:[#allocation2 + $0x4] sm:$0x1] %v98
    %s100 = sld [smem:[#allocation4 + $0x5]]
    %s101 = scalar_lea.vmem [#allocation8], %s100
    %v102 = vld [vmem:[%s101] sm:$0x1]
    %103 = vst [vmem:[#allocation2 + $0x5] sm:$0x1] %v102
    %s104 = sld [smem:[#allocation4 + $0x6]]
    %s105 = scalar_lea.vmem [#allocation8], %s104
    %v106 = vld [vmem:[%s105] sm:$0x1]
    %107 = vst [vmem:[#allocation2 + $0x6] sm:$0x1] %v106
    %s108 = sld [smem:[#allocation4 + $0x7]]
    %s109 = scalar_lea.vmem [#allocation8], %s108
    %v110 = vld [vmem:[%s109] sm:$0x1]
    %111 = vst [vmem:[#allocation2 + $0x7] sm:$0x1] %v110
    %v112 = vld [vmem:[#allocation2] sm:$0xff]
    %v113 = vpack.c.bf16 %v112, %v112
    %v114 = vld [vmem:[#allocation9] sm:$0xff]
    %v115 = vld [vmem:[#allocation9 + $0x8] sm:$0xf]
    %v116 = vld [vmem:[#allocation9 + $0xc] sm:$0xff]
    %v117 = vld [vmem:[#allocation9 + $0x14] sm:$0xf]
    %v118 = vld [vmem:[#allocation9 + $0x18] sm:$0xff]
    %v119 = vld [vmem:[#allocation9 + $0x20] sm:$0xf]
    %v120 = vld [vmem:[#allocation9 + $0x24] sm:$0xff]
    %v121 = vld [vmem:[#allocation9 + $0x2c] sm:$0xf]
    %v122 = vld [vmem:[#allocation9 + $0x30] sm:$0xff]
    %v123 = vld [vmem:[#allocation9 + $0x38] sm:$0xf]
    %v124 = vld [vmem:[#allocation9 + $0x3c] sm:$0xff]
    %v125 = vld [vmem:[#allocation9 + $0x44] sm:$0xf]
    %v126 = vld [vmem:[#allocation9 + $0x48] sm:$0xff]
    %v127 = vld [vmem:[#allocation9 + $0x50] sm:$0xf]
    %v128 = vld [vmem:[#allocation9 + $0x54] sm:$0xff]
    %v129 = vld [vmem:[#allocation9 + $0x5c] sm:$0xf]
    %v130 = vld [vmem:[#allocation9 + $0x60] sm:$0xff]
    %v131 = vld [vmem:[#allocation9 + $0x68] sm:$0xf]
    %v132 = vld [vmem:[#allocation9 + $0x6c] sm:$0xff]
    %v133 = vld [vmem:[#allocation9 + $0x74] sm:$0xf]
    %v134 = vld [vmem:[#allocation9 + $0x78] sm:$0xff]
    %v135 = vld [vmem:[#allocation9 + $0x80] sm:$0xf]
    %v136 = vld [vmem:[#allocation9 + $0x84] sm:$0xff]
    %v137 = vld [vmem:[#allocation9 + $0x8c] sm:$0xf]
    %v138 = vld [vmem:[#allocation9 + $0x90] sm:$0xff]
    %v139 = vld [vmem:[#allocation9 + $0x98] sm:$0xf]
    %v140 = vld [vmem:[#allocation9 + $0x9c] sm:$0xff]
    %v141 = vld [vmem:[#allocation9 + $0xa4] sm:$0xf]
    %v142 = vld [vmem:[#allocation9 + $0xa8] sm:$0xff]
    %v143 = vld [vmem:[#allocation9 + $0xb0] sm:$0xf]
    %v144 = vld [vmem:[#allocation9 + $0xb4] sm:$0xff]
    %v145 = vld [vmem:[#allocation9 + $0xbc] sm:$0xf]
    %v146 = vld [vmem:[%s4] sm:$0x7]
    %v148 = vlaneseq
    %v149 = vshrl.u32 %v148, 7
    %v150 = vsub.s32 0, %v149
    %v151 = vrot.slane %v146, %v150
    %v152 = vlaneseq
    %v153 = vshrl.u32 %v152, 7
    %v154 = vsub.s32 1, %v153
    %v155 = vrot.slane %v146, %v154
    %v156 = vlaneseq
    %v157 = vshrl.u32 %v156, 7
    %v158 = vsub.s32 2, %v157
    %v159 = vrot.slane %v146, %v158
    %v195 = vunpack.c.l.b16 %v114
    %v196 = vunpack.c.h.b16 %v114
    %v197 = vunpack.c.l.b16 %v115
    %v198 = vunpack.c.l.b16 %v116
    %v199 = vunpack.c.h.b16 %v116
    %v200 = vunpack.c.l.b16 %v117
    %v201 = vunpack.c.l.b16 %v118
    %v202 = vunpack.c.h.b16 %v118
    %v203 = vunpack.c.l.b16 %v119
    %v204 = vunpack.c.l.b16 %v120
    %v205 = vunpack.c.h.b16 %v120
    %v206 = vunpack.c.l.b16 %v121
    %v207 = vunpack.c.l.b16 %v122
    %v208 = vunpack.c.h.b16 %v122
    %v209 = vunpack.c.l.b16 %v123
    %v210 = vunpack.c.l.b16 %v124
    %v211 = vunpack.c.h.b16 %v124
    %v212 = vunpack.c.l.b16 %v125
    %v213 = vunpack.c.l.b16 %v126
    %v214 = vunpack.c.h.b16 %v126
    %v215 = vunpack.c.l.b16 %v127
    %v216 = vunpack.c.l.b16 %v128
    %v217 = vunpack.c.h.b16 %v128
    %v218 = vunpack.c.l.b16 %v129
    %v219 = vunpack.c.l.b16 %v130
    %v220 = vunpack.c.h.b16 %v130
    %v221 = vunpack.c.l.b16 %v131
    %v222 = vunpack.c.l.b16 %v132
    %v223 = vunpack.c.h.b16 %v132
    %v224 = vunpack.c.l.b16 %v133
    %v225 = vunpack.c.l.b16 %v134
    %v226 = vunpack.c.h.b16 %v134
    %v227 = vunpack.c.l.b16 %v135
    %v228 = vunpack.c.l.b16 %v136
    %v229 = vunpack.c.h.b16 %v136
    %v230 = vunpack.c.l.b16 %v137
    %v231 = vunpack.c.l.b16 %v138
    %v232 = vunpack.c.h.b16 %v138
    %v233 = vunpack.c.l.b16 %v139
    %v234 = vunpack.c.l.b16 %v140
    %v235 = vunpack.c.h.b16 %v140
    %v236 = vunpack.c.l.b16 %v141
    %v237 = vunpack.c.l.b16 %v142
    %v238 = vunpack.c.h.b16 %v142
    %v239 = vunpack.c.l.b16 %v143
    %v240 = vunpack.c.l.b16 %v144
    %v241 = vunpack.c.h.b16 %v144
    %v242 = vunpack.c.l.b16 %v145
    %v243 = vpack.c.b16 %v198, %v195
    %v244 = vpack.c.b16 %v199, %v196
    %v245 = vpack.c.b16 %v200, %v197
    %v246 = vpack.c.b16 %v204, %v201
    %v247 = vpack.c.b16 %v205, %v202
    %v248 = vpack.c.b16 %v206, %v203
    %v249 = vpack.c.b16 %v210, %v207
    %v250 = vpack.c.b16 %v211, %v208
    %v251 = vpack.c.b16 %v212, %v209
    %v252 = vpack.c.b16 %v216, %v213
    %v253 = vpack.c.b16 %v217, %v214
    %v254 = vpack.c.b16 %v218, %v215
    %v255 = vpack.c.b16 %v222, %v219
    %v256 = vpack.c.b16 %v223, %v220
    %v257 = vpack.c.b16 %v224, %v221
    %v258 = vpack.c.b16 %v228, %v225
    %v259 = vpack.c.b16 %v229, %v226
    %v260 = vpack.c.b16 %v230, %v227
    %v261 = vpack.c.b16 %v234, %v231
    %v262 = vpack.c.b16 %v235, %v232
    %v263 = vpack.c.b16 %v236, %v233
    %v264 = vpack.c.b16 %v240, %v237
    %v265 = vpack.c.b16 %v241, %v238
    %v266 = vpack.c.b16 %v242, %v239
    %291 = vmatprep.subr.bf16.mxu0 %v244
    %292 = vmatpush1.bf16.msra.mxu0 %v243
    %293 = vmatprep.subr.bf16.mxu0 %v247
    %294 = vmatpush1.bf16.msra.mxu0 %v246
    %295 = vmatprep.subr.bf16.mxu0 %v250
    %296 = vmatpush1.bf16.msra.mxu0 %v249
    %297 = vmatprep.subr.bf16.mxu0 %v253
    %298 = vmatpush1.bf16.msra.mxu0 %v252
    %299 = vmatprep.subr.bf16.mxu0 %v256
    %300 = vmatpush1.bf16.msra.mxu0 %v255
    %301 = vmatprep.subr.bf16.mxu0 %v259
    %302 = vmatpush1.bf16.msra.mxu0 %v258
    %303 = vmatprep.subr.bf16.mxu0 %v262
    %304 = vmatpush1.bf16.msra.mxu0 %v261
    %305 = vmatprep.subr.bf16.mxu0 %v265
    %306 = vmatpush1.bf16.msra.mxu0 %v264
    %307 = vmatprep.subr.bf16.mxu0 0
    %308 = vmatpush1.bf16.msra.mxu0 0
    %309 = vmatprep.subr.bf16.mxu0 0
    %310 = vmatpush1.bf16.msra.mxu0 0
    %311 = vmatprep.subr.bf16.mxu0 0
    %312 = vmatpush1.bf16.msra.mxu0 0
    %313 = vmatprep.subr.bf16.mxu0 0
    %314 = vmatpush1.bf16.msra.mxu0 0
    %315 = vmatprep.subr.bf16.mxu0 0
    %316 = vmatpush1.bf16.msra.mxu0 0
    %317 = vmatprep.subr.bf16.mxu0 0
    %318 = vmatpush1.bf16.msra.mxu0 0
    %319 = vmatprep.subr.bf16.mxu0 0
    %320 = vmatpush1.bf16.msra.mxu0 0
    %321 = vmatprep.subr.bf16.mxu0 0
    %322 = vmatpush1.bf16.msra.mxu0 0
    %323 = vmatprep.mubr.bf16.mxu0 0
    %324 = vmatmul.mubr.bf16.gmra.mrb[0].mxu0 %v113
    %v325 = vpop.f32.mrb[0].mxu0
    %v326 = vadd.f32 %v151, %v325
    %v327 = vpop.f32.mrb[0].mxu0
    %v328 = vadd.f32 %v155, %v327
    %v329 = vpop.f32.mrb[0].mxu0
    %v330 = vpop.f32.mrb[0].mxu0
    %331 = vdwg.mxu0
    %332 = vmatprep.subr.bf16.mxu0 0
    %333 = vmatpush1.bf16.msra.mxu0 %v245
    %334 = vmatprep.subr.bf16.mxu0 0
    %335 = vmatpush1.bf16.msra.mxu0 %v248
    %336 = vmatprep.subr.bf16.mxu0 0
    %337 = vmatpush1.bf16.msra.mxu0 %v251
    %338 = vmatprep.subr.bf16.mxu0 0
    %339 = vmatpush1.bf16.msra.mxu0 %v254
    %340 = vmatprep.subr.bf16.mxu0 0
    %341 = vmatpush1.bf16.msra.mxu0 %v257
    %342 = vmatprep.subr.bf16.mxu0 0
    %343 = vmatpush1.bf16.msra.mxu0 %v260
    %344 = vmatprep.subr.bf16.mxu0 0
    %345 = vmatpush1.bf16.msra.mxu0 %v263
    %346 = vmatprep.subr.bf16.mxu0 0
    %347 = vmatpush1.bf16.msra.mxu0 %v266
    %348 = vmatprep.subr.bf16.mxu0 0
    %349 = vmatpush1.bf16.msra.mxu0 0
    %350 = vmatprep.subr.bf16.mxu0 0
    %351 = vmatpush1.bf16.msra.mxu0 0
    %352 = vmatprep.subr.bf16.mxu0 0
    %353 = vmatpush1.bf16.msra.mxu0 0
    %354 = vmatprep.subr.bf16.mxu0 0
    %355 = vmatpush1.bf16.msra.mxu0 0
    %356 = vmatprep.subr.bf16.mxu0 0
    %357 = vmatpush1.bf16.msra.mxu0 0
    %358 = vmatprep.subr.bf16.mxu0 0
    %359 = vmatpush1.bf16.msra.mxu0 0
    %360 = vmatprep.subr.bf16.mxu0 0
    %361 = vmatpush1.bf16.msra.mxu0 0
    %362 = vmatprep.subr.bf16.mxu0 0
    %363 = vmatpush1.bf16.msra.mxu0 0
    %364 = vmatprep.mubr.bf16.mxu0 0
    %365 = vmatmul.mubr.bf16.gmra.mrb[0].mxu0 %v113
    %v366 = vpop.f32.mrb[0].mxu0
    %v367 = vadd.f32 %v159, %v366
    %v368 = vpop.f32.mrb[0].mxu0
    %v369 = vpop.f32.mrb[0].mxu0
    %v370 = vpop.f32.mrb[0].mxu0
    %371 = vdwg.mxu0
    %372 = vst [vmem:[#allocation3] sm:$0xff] %v326
    %373 = vst [vmem:[#allocation3 + $0x8] sm:$0xff] %v328
    %374 = vst [vmem:[#allocation3 + $0x10] sm:$0xff] %v367
    %v375 = vld [vmem:[#allocation11] sm:$0xff]
    %v376 = vld [vmem:[#allocation11 + $0x8] sm:$0xf]
    %v377 = vld [vmem:[#allocation11 + $0xc] sm:$0xff]
    %v378 = vld [vmem:[#allocation11 + $0x14] sm:$0xf]
    %v379 = vld [vmem:[#allocation11 + $0x18] sm:$0xff]
    %v380 = vld [vmem:[#allocation11 + $0x20] sm:$0xf]
    %v381 = vld [vmem:[#allocation11 + $0x24] sm:$0xff]
    %v382 = vld [vmem:[#allocation11 + $0x2c] sm:$0xf]
    %v383 = vld [vmem:[#allocation11 + $0x30] sm:$0xff]
    %v384 = vld [vmem:[#allocation11 + $0x38] sm:$0xf]
    %v385 = vld [vmem:[#allocation11 + $0x3c] sm:$0xff]
    %v386 = vld [vmem:[#allocation11 + $0x44] sm:$0xf]
    %v387 = vld [vmem:[#allocation11 + $0x48] sm:$0xff]
    %v388 = vld [vmem:[#allocation11 + $0x50] sm:$0xf]
    %v389 = vld [vmem:[#allocation11 + $0x54] sm:$0xff]
    %v390 = vld [vmem:[#allocation11 + $0x5c] sm:$0xf]
    %v391 = vld [vmem:[#allocation11 + $0x60] sm:$0xff]
    %v392 = vld [vmem:[#allocation11 + $0x68] sm:$0xf]
    %v393 = vld [vmem:[#allocation11 + $0x6c] sm:$0xff]
    %v394 = vld [vmem:[#allocation11 + $0x74] sm:$0xf]
    %v395 = vld [vmem:[#allocation11 + $0x78] sm:$0xff]
    %v396 = vld [vmem:[#allocation11 + $0x80] sm:$0xf]
    %v397 = vld [vmem:[#allocation11 + $0x84] sm:$0xff]
    %v398 = vld [vmem:[#allocation11 + $0x8c] sm:$0xf]
    %v399 = vld [vmem:[#allocation11 + $0x90] sm:$0xff]
    %v400 = vld [vmem:[#allocation11 + $0x98] sm:$0xf]
    %v401 = vld [vmem:[#allocation11 + $0x9c] sm:$0xff]
    %v402 = vld [vmem:[#allocation11 + $0xa4] sm:$0xf]
    %v403 = vld [vmem:[#allocation11 + $0xa8] sm:$0xff]
    %v404 = vld [vmem:[#allocation11 + $0xb0] sm:$0xf]
    %v405 = vld [vmem:[#allocation11 + $0xb4] sm:$0xff]
    %v406 = vld [vmem:[#allocation11 + $0xbc] sm:$0xf]
    %v407 = vld [vmem:[%s5] sm:$0x1]
    %v408 = vld [vmem:[%s6] sm:$0x1]
    %v409 = vld [vmem:[#allocation3] ss:$8 sm:$0x7]
    %v410 = vpack.c.bf16 %v408, %v408
    %v443 = vunpack.c.l.b16 %v375
    %v444 = vunpack.c.h.b16 %v375
    %v445 = vunpack.c.l.b16 %v376
    %v446 = vunpack.c.l.b16 %v377
    %v447 = vunpack.c.h.b16 %v377
    %v448 = vunpack.c.l.b16 %v378
    %v449 = vunpack.c.l.b16 %v379
    %v450 = vunpack.c.h.b16 %v379
    %v451 = vunpack.c.l.b16 %v380
    %v452 = vunpack.c.l.b16 %v381
    %v453 = vunpack.c.h.b16 %v381
    %v454 = vunpack.c.l.b16 %v382
    %v455 = vunpack.c.l.b16 %v383
    %v456 = vunpack.c.h.b16 %v383
    %v457 = vunpack.c.l.b16 %v384
    %v458 = vunpack.c.l.b16 %v385
    %v459 = vunpack.c.h.b16 %v385
    %v460 = vunpack.c.l.b16 %v386
    %v461 = vunpack.c.l.b16 %v387
    %v462 = vunpack.c.h.b16 %v387
    %v463 = vunpack.c.l.b16 %v388
    %v464 = vunpack.c.l.b16 %v389
    %v465 = vunpack.c.h.b16 %v389
    %v466 = vunpack.c.l.b16 %v390
    %v467 = vunpack.c.l.b16 %v391
    %v468 = vunpack.c.h.b16 %v391
    %v469 = vunpack.c.l.b16 %v392
    %v470 = vunpack.c.l.b16 %v393
    %v471 = vunpack.c.h.b16 %v393
    %v472 = vunpack.c.l.b16 %v394
    %v473 = vunpack.c.l.b16 %v395
    %v474 = vunpack.c.h.b16 %v395
    %v475 = vunpack.c.l.b16 %v396
    %v476 = vunpack.c.l.b16 %v397
    %v477 = vunpack.c.h.b16 %v397
    %v478 = vunpack.c.l.b16 %v398
    %v479 = vunpack.c.l.b16 %v399
    %v480 = vunpack.c.h.b16 %v399
    %v481 = vunpack.c.l.b16 %v400
    %v482 = vunpack.c.l.b16 %v401
    %v483 = vunpack.c.h.b16 %v401
    %v484 = vunpack.c.l.b16 %v402
    %v485 = vunpack.c.l.b16 %v403
    %v486 = vunpack.c.h.b16 %v403
    %v487 = vunpack.c.l.b16 %v404
    %v488 = vunpack.c.l.b16 %v405
    %v489 = vunpack.c.h.b16 %v405
    %v490 = vunpack.c.l.b16 %v406
    %v491 = vpack.c.b16 %v446, %v443
    %v492 = vpack.c.b16 %v447, %v444
    %v493 = vpack.c.b16 %v448, %v445
    %v494 = vpack.c.b16 %v452, %v449
    %v495 = vpack.c.b16 %v453, %v450
    %v496 = vpack.c.b16 %v454, %v451
    %v497 = vpack.c.b16 %v458, %v455
    %v498 = vpack.c.b16 %v459, %v456
    %v499 = vpack.c.b16 %v460, %v457
    %v500 = vpack.c.b16 %v464, %v461
    %v501 = vpack.c.b16 %v465, %v462
    %v502 = vpack.c.b16 %v466, %v463
    %v503 = vpack.c.b16 %v470, %v467
    %v504 = vpack.c.b16 %v471, %v468
    %v505 = vpack.c.b16 %v472, %v469
    %v506 = vpack.c.b16 %v476, %v473
    %v507 = vpack.c.b16 %v477, %v474
    %v508 = vpack.c.b16 %v478, %v475
    %v509 = vpack.c.b16 %v482, %v479
    %v510 = vpack.c.b16 %v483, %v480
    %v511 = vpack.c.b16 %v484, %v481
    %v512 = vpack.c.b16 %v488, %v485
    %v513 = vpack.c.b16 %v489, %v486
    %v514 = vpack.c.b16 %v490, %v487
    %539 = vmatprep.subr.bf16.mxu0 %v492
    %540 = vmatpush1.bf16.msra.mxu0 %v491
    %541 = vmatprep.subr.bf16.mxu0 %v495
    %542 = vmatpush1.bf16.msra.mxu0 %v494
    %543 = vmatprep.subr.bf16.mxu0 %v498
    %544 = vmatpush1.bf16.msra.mxu0 %v497
    %545 = vmatprep.subr.bf16.mxu0 %v501
    %546 = vmatpush1.bf16.msra.mxu0 %v500
    %547 = vmatprep.subr.bf16.mxu0 %v504
    %548 = vmatpush1.bf16.msra.mxu0 %v503
    %549 = vmatprep.subr.bf16.mxu0 %v507
    %550 = vmatpush1.bf16.msra.mxu0 %v506
    %551 = vmatprep.subr.bf16.mxu0 %v510
    %552 = vmatpush1.bf16.msra.mxu0 %v509
    %553 = vmatprep.subr.bf16.mxu0 %v513
    %554 = vmatpush1.bf16.msra.mxu0 %v512
    %555 = vmatprep.subr.bf16.mxu0 0
    %556 = vmatpush1.bf16.msra.mxu0 0
    %557 = vmatprep.subr.bf16.mxu0 0
    %558 = vmatpush1.bf16.msra.mxu0 0
    %559 = vmatprep.subr.bf16.mxu0 0
    %560 = vmatpush1.bf16.msra.mxu0 0
    %561 = vmatprep.subr.bf16.mxu0 0
    %562 = vmatpush1.bf16.msra.mxu0 0
    %563 = vmatprep.subr.bf16.mxu0 0
    %564 = vmatpush1.bf16.msra.mxu0 0
    %565 = vmatprep.subr.bf16.mxu0 0
    %566 = vmatpush1.bf16.msra.mxu0 0
    %567 = vmatprep.subr.bf16.mxu0 0
    %568 = vmatpush1.bf16.msra.mxu0 0
    %569 = vmatprep.subr.bf16.mxu0 0
    %570 = vmatpush1.bf16.msra.mxu0 0
    %571 = vmatprep.mubr.bf16.mxu0 0
    %572 = vmatmul.mubr.bf16.gmra.mrb[0].mxu0 %v410
    %v573 = vpop.f32.mrb[0].mxu0
    %v574 = vadd.f32 0.0, %v573
    %v575 = vpop.f32.mrb[0].mxu0
    %v576 = vadd.f32 0.0, %v575
    %v577 = vpop.f32.mrb[0].mxu0
    %v578 = vpop.f32.mrb[0].mxu0
    %579 = vdwg.mxu0
    %580 = vmatprep.subr.bf16.mxu0 0
    %581 = vmatpush1.bf16.msra.mxu0 %v493
    %582 = vmatprep.subr.bf16.mxu0 0
    %583 = vmatpush1.bf16.msra.mxu0 %v496
    %584 = vmatprep.subr.bf16.mxu0 0
    %585 = vmatpush1.bf16.msra.mxu0 %v499
    %586 = vmatprep.subr.bf16.mxu0 0
    %587 = vmatpush1.bf16.msra.mxu0 %v502
    %588 = vmatprep.subr.bf16.mxu0 0
    %589 = vmatpush1.bf16.msra.mxu0 %v505
    %590 = vmatprep.subr.bf16.mxu0 0
    %591 = vmatpush1.bf16.msra.mxu0 %v508
    %592 = vmatprep.subr.bf16.mxu0 0
    %593 = vmatpush1.bf16.msra.mxu0 %v511
    %594 = vmatprep.subr.bf16.mxu0 0
    %595 = vmatpush1.bf16.msra.mxu0 %v514
    %596 = vmatprep.subr.bf16.mxu0 0
    %597 = vmatpush1.bf16.msra.mxu0 0
    %598 = vmatprep.subr.bf16.mxu0 0
    %599 = vmatpush1.bf16.msra.mxu0 0
    %600 = vmatprep.subr.bf16.mxu0 0
    %601 = vmatpush1.bf16.msra.mxu0 0
    %602 = vmatprep.subr.bf16.mxu0 0
    %603 = vmatpush1.bf16.msra.mxu0 0
    %604 = vmatprep.subr.bf16.mxu0 0
    %605 = vmatpush1.bf16.msra.mxu0 0
    %606 = vmatprep.subr.bf16.mxu0 0
    %607 = vmatpush1.bf16.msra.mxu0 0
    %608 = vmatprep.subr.bf16.mxu0 0
    %609 = vmatpush1.bf16.msra.mxu0 0
    %610 = vmatprep.subr.bf16.mxu0 0
    %611 = vmatpush1.bf16.msra.mxu0 0
    %612 = vmatprep.mubr.bf16.mxu0 0
    %613 = vmatmul.mubr.bf16.gmra.mrb[0].mxu0 %v410
    %v614 = vpop.f32.mrb[0].mxu0
    %v615 = vadd.f32 0.0, %v614
    %v616 = vpop.f32.mrb[0].mxu0
    %v617 = vpop.f32.mrb[0].mxu0
    %v618 = vpop.f32.mrb[0].mxu0
    %619 = vdwg.mxu0
    %v620 = vadd.f32 %v409, %v574
    %v621 = vmul.f32 %v620, 0.5
    %v622 = vtanh.pop %v621
    %v623 = vadd.f32 %v622, 1.0
    %v624 = vmul.f32 %v623, 0.5
    %v626 = vrot.slane %v409, 1
    %v628 = vadd.f32 %v626, %v576
    %v629 = vmul.f32 %v628, 0.5
    %v630 = vtanh.pop %v629
    %v631 = vadd.f32 %v630, 1.0
    %v632 = vmul.f32 %v631, 0.5
    %v633 = vadd.f32 %v615, %v407
    %v634 = vmul.f32 %v624, %v633
    %v635 = vrot.slane %v409, 2
    %v637 = vadd.f32 %v635, %v634
    %v638 = vtanh.pop %v637
    %v639 = vsub.f32 1.0, %v632
    %v640 = vmul.f32 %v639, %v638
    %v641 = vmul.f32 %v632, %v408
    %v642 = vadd.f32 %v640, %v641
    %643 = vst [vmem:[#allocation12] sm:$0x1] %v642
    %s644 = scalar_lea.vmem [#allocation3], 1
    %v645 = vld [vmem:[%s644] ss:$8 sm:$0x7]
    %v646 = vpack.c.bf16 %v642, %v642
    %647 = vmatprep.subr.bf16.mxu0 %v492
    %648 = vmatpush1.bf16.msra.mxu0 %v491
    %649 = vmatprep.subr.bf16.mxu0 %v495
    %650 = vmatpush1.bf16.msra.mxu0 %v494
    %651 = vmatprep.subr.bf16.mxu0 %v498
    %652 = vmatpush1.bf16.msra.mxu0 %v497
    %653 = vmatprep.subr.bf16.mxu0 %v501
    %654 = vmatpush1.bf16.msra.mxu0 %v500
    %655 = vmatprep.subr.bf16.mxu0 %v504
    %656 = vmatpush1.bf16.msra.mxu0 %v503
    %657 = vmatprep.subr.bf16.mxu0 %v507
    %658 = vmatpush1.bf16.msra.mxu0 %v506
    %659 = vmatprep.subr.bf16.mxu0 %v510
    %660 = vmatpush1.bf16.msra.mxu0 %v509
    %661 = vmatprep.subr.bf16.mxu0 %v513
    %662 = vmatpush1.bf16.msra.mxu0 %v512
    %663 = vmatprep.subr.bf16.mxu0 0
    %664 = vmatpush1.bf16.msra.mxu0 0
    %665 = vmatprep.subr.bf16.mxu0 0
    %666 = vmatpush1.bf16.msra.mxu0 0
    %667 = vmatprep.subr.bf16.mxu0 0
    %668 = vmatpush1.bf16.msra.mxu0 0
    %669 = vmatprep.subr.bf16.mxu0 0
    %670 = vmatpush1.bf16.msra.mxu0 0
    %671 = vmatprep.subr.bf16.mxu0 0
    %672 = vmatpush1.bf16.msra.mxu0 0
    %673 = vmatprep.subr.bf16.mxu0 0
    %674 = vmatpush1.bf16.msra.mxu0 0
    %675 = vmatprep.subr.bf16.mxu0 0
    %676 = vmatpush1.bf16.msra.mxu0 0
    %677 = vmatprep.subr.bf16.mxu0 0
    %678 = vmatpush1.bf16.msra.mxu0 0
    %679 = vmatprep.mubr.bf16.mxu0 0
    %680 = vmatmul.mubr.bf16.gmra.mrb[0].mxu0 %v646
    %v681 = vpop.f32.mrb[0].mxu0
    %v682 = vadd.f32 0.0, %v681
    %v683 = vpop.f32.mrb[0].mxu0
    %v684 = vadd.f32 0.0, %v683
    %v685 = vpop.f32.mrb[0].mxu0
    %v686 = vpop.f32.mrb[0].mxu0
    %687 = vdwg.mxu0
    %688 = vmatprep.subr.bf16.mxu0 0
    %689 = vmatpush1.bf16.msra.mxu0 %v493
    %690 = vmatprep.subr.bf16.mxu0 0
    %691 = vmatpush1.bf16.msra.mxu0 %v496
    %692 = vmatprep.subr.bf16.mxu0 0
    %693 = vmatpush1.bf16.msra.mxu0 %v499
    %694 = vmatprep.subr.bf16.mxu0 0
    %695 = vmatpush1.bf16.msra.mxu0 %v502
    %696 = vmatprep.subr.bf16.mxu0 0
    %697 = vmatpush1.bf16.msra.mxu0 %v505
    %698 = vmatprep.subr.bf16.mxu0 0
    %699 = vmatpush1.bf16.msra.mxu0 %v508
    %700 = vmatprep.subr.bf16.mxu0 0
    %701 = vmatpush1.bf16.msra.mxu0 %v511
    %702 = vmatprep.subr.bf16.mxu0 0
    %703 = vmatpush1.bf16.msra.mxu0 %v514
    %704 = vmatprep.subr.bf16.mxu0 0
    %705 = vmatpush1.bf16.msra.mxu0 0
    %706 = vmatprep.subr.bf16.mxu0 0
    %707 = vmatpush1.bf16.msra.mxu0 0
    %708 = vmatprep.subr.bf16.mxu0 0
    %709 = vmatpush1.bf16.msra.mxu0 0
    %710 = vmatprep.subr.bf16.mxu0 0
    %711 = vmatpush1.bf16.msra.mxu0 0
    %712 = vmatprep.subr.bf16.mxu0 0
    %713 = vmatpush1.bf16.msra.mxu0 0
    %714 = vmatprep.subr.bf16.mxu0 0
    %715 = vmatpush1.bf16.msra.mxu0 0
    %716 = vmatprep.subr.bf16.mxu0 0
    %717 = vmatpush1.bf16.msra.mxu0 0
    %718 = vmatprep.subr.bf16.mxu0 0
    %719 = vmatpush1.bf16.msra.mxu0 0
    %720 = vmatprep.mubr.bf16.mxu0 0
    %721 = vmatmul.mubr.bf16.gmra.mrb[0].mxu0 %v646
    %v722 = vpop.f32.mrb[0].mxu0
    %v723 = vadd.f32 0.0, %v722
    %v724 = vpop.f32.mrb[0].mxu0
    %v725 = vpop.f32.mrb[0].mxu0
    %v726 = vpop.f32.mrb[0].mxu0
    %727 = vdwg.mxu0
    %v728 = vadd.f32 %v645, %v682
    %v729 = vmul.f32 %v728, 0.5
    %v730 = vtanh.pop %v729
    %v731 = vadd.f32 %v730, 1.0
    %v732 = vmul.f32 %v731, 0.5
    %v734 = vrot.slane %v645, 1
    %v736 = vadd.f32 %v734, %v684
    %v737 = vmul.f32 %v736, 0.5
    %v738 = vtanh.pop %v737
    %v739 = vadd.f32 %v738, 1.0
    %v740 = vmul.f32 %v739, 0.5
    %v741 = vadd.f32 %v723, %v407
    %v742 = vmul.f32 %v732, %v741
    %v743 = vrot.slane %v645, 2
    %v745 = vadd.f32 %v743, %v742
    %v746 = vtanh.pop %v745
    %v747 = vsub.f32 1.0, %v740
    %v748 = vmul.f32 %v747, %v746
    %v749 = vmul.f32 %v740, %v642
    %v750 = vadd.f32 %v748, %v749
    %751 = vst [vmem:[#allocation12 + $0x1] sm:$0x1] %v750
    %s752 = scalar_lea.vmem [#allocation3], 2
    %v753 = vld [vmem:[%s752] ss:$8 sm:$0x7]
    %v754 = vpack.c.bf16 %v750, %v750
    %755 = vmatprep.subr.bf16.mxu0 %v492
    %756 = vmatpush1.bf16.msra.mxu0 %v491
    %757 = vmatprep.subr.bf16.mxu0 %v495
    %758 = vmatpush1.bf16.msra.mxu0 %v494
    %759 = vmatprep.subr.bf16.mxu0 %v498
    %760 = vmatpush1.bf16.msra.mxu0 %v497
    %761 = vmatprep.subr.bf16.mxu0 %v501
    %762 = vmatpush1.bf16.msra.mxu0 %v500
    %763 = vmatprep.subr.bf16.mxu0 %v504
    %764 = vmatpush1.bf16.msra.mxu0 %v503
    %765 = vmatprep.subr.bf16.mxu0 %v507
    %766 = vmatpush1.bf16.msra.mxu0 %v506
    %767 = vmatprep.subr.bf16.mxu0 %v510
    %768 = vmatpush1.bf16.msra.mxu0 %v509
    %769 = vmatprep.subr.bf16.mxu0 %v513
    %770 = vmatpush1.bf16.msra.mxu0 %v512
    %771 = vmatprep.subr.bf16.mxu0 0
    %772 = vmatpush1.bf16.msra.mxu0 0
    %773 = vmatprep.subr.bf16.mxu0 0
    %774 = vmatpush1.bf16.msra.mxu0 0
    %775 = vmatprep.subr.bf16.mxu0 0
    %776 = vmatpush1.bf16.msra.mxu0 0
    %777 = vmatprep.subr.bf16.mxu0 0
    %778 = vmatpush1.bf16.msra.mxu0 0
    %779 = vmatprep.subr.bf16.mxu0 0
    %780 = vmatpush1.bf16.msra.mxu0 0
    %781 = vmatprep.subr.bf16.mxu0 0
    %782 = vmatpush1.bf16.msra.mxu0 0
    %783 = vmatprep.subr.bf16.mxu0 0
    %784 = vmatpush1.bf16.msra.mxu0 0
    %785 = vmatprep.subr.bf16.mxu0 0
    %786 = vmatpush1.bf16.msra.mxu0 0
    %787 = vmatprep.mubr.bf16.mxu0 0
    %788 = vmatmul.mubr.bf16.gmra.mrb[0].mxu0 %v754
    %v789 = vpop.f32.mrb[0].mxu0
    %v790 = vadd.f32 0.0, %v789
    %v791 = vpop.f32.mrb[0].mxu0
    %v792 = vadd.f32 0.0, %v791
    %v793 = vpop.f32.mrb[0].mxu0
    %v794 = vpop.f32.mrb[0].mxu0
    %795 = vdwg.mxu0
    %796 = vmatprep.subr.bf16.mxu0 0
    %797 = vmatpush1.bf16.msra.mxu0 %v493
    %798 = vmatprep.subr.bf16.mxu0 0
    %799 = vmatpush1.bf16.msra.mxu0 %v496
    %800 = vmatprep.subr.bf16.mxu0 0
    %801 = vmatpush1.bf16.msra.mxu0 %v499
    %802 = vmatprep.subr.bf16.mxu0 0
    %803 = vmatpush1.bf16.msra.mxu0 %v502
    %804 = vmatprep.subr.bf16.mxu0 0
    %805 = vmatpush1.bf16.msra.mxu0 %v505
    %806 = vmatprep.subr.bf16.mxu0 0
    %807 = vmatpush1.bf16.msra.mxu0 %v508
    %808 = vmatprep.subr.bf16.mxu0 0
    %809 = vmatpush1.bf16.msra.mxu0 %v511
    %810 = vmatprep.subr.bf16.mxu0 0
    %811 = vmatpush1.bf16.msra.mxu0 %v514
    %812 = vmatprep.subr.bf16.mxu0 0
    %813 = vmatpush1.bf16.msra.mxu0 0
    %814 = vmatprep.subr.bf16.mxu0 0
    %815 = vmatpush1.bf16.msra.mxu0 0
    %816 = vmatprep.subr.bf16.mxu0 0
    %817 = vmatpush1.bf16.msra.mxu0 0
    %818 = vmatprep.subr.bf16.mxu0 0
    %819 = vmatpush1.bf16.msra.mxu0 0
    %820 = vmatprep.subr.bf16.mxu0 0
    %821 = vmatpush1.bf16.msra.mxu0 0
    %822 = vmatprep.subr.bf16.mxu0 0
    %823 = vmatpush1.bf16.msra.mxu0 0
    %824 = vmatprep.subr.bf16.mxu0 0
    %825 = vmatpush1.bf16.msra.mxu0 0
    %826 = vmatprep.subr.bf16.mxu0 0
    %827 = vmatpush1.bf16.msra.mxu0 0
    %828 = vmatprep.mubr.bf16.mxu0 0
    %829 = vmatmul.mubr.bf16.gmra.mrb[0].mxu0 %v754
    %v830 = vpop.f32.mrb[0].mxu0
    %v831 = vadd.f32 0.0, %v830
    %v832 = vpop.f32.mrb[0].mxu0
    %v833 = vpop.f32.mrb[0].mxu0
    %v834 = vpop.f32.mrb[0].mxu0
    %835 = vdwg.mxu0
    %v836 = vadd.f32 %v753, %v790
    %v837 = vmul.f32 %v836, 0.5
    %v838 = vtanh.pop %v837
    %v839 = vadd.f32 %v838, 1.0
    %v840 = vmul.f32 %v839, 0.5
    %v842 = vrot.slane %v753, 1
    %v844 = vadd.f32 %v842, %v792
    %v845 = vmul.f32 %v844, 0.5
    %v846 = vtanh.pop %v845
    %v847 = vadd.f32 %v846, 1.0
    %v848 = vmul.f32 %v847, 0.5
    %v849 = vadd.f32 %v831, %v407
    %v850 = vmul.f32 %v840, %v849
    %v851 = vrot.slane %v753, 2
    %v853 = vadd.f32 %v851, %v850
    %v854 = vtanh.pop %v853
    %v855 = vsub.f32 1.0, %v848
    %v856 = vmul.f32 %v855, %v854
    %v857 = vmul.f32 %v848, %v750
    %v858 = vadd.f32 %v856, %v857
    %859 = vst [vmem:[#allocation12 + $0x2] sm:$0x1] %v858
    %s860 = scalar_lea.vmem [#allocation3], 3
    %v861 = vld [vmem:[%s860] ss:$8 sm:$0x7]
    %v862 = vpack.c.bf16 %v858, %v858
    %863 = vmatprep.subr.bf16.mxu0 %v492
    %864 = vmatpush1.bf16.msra.mxu0 %v491
    %865 = vmatprep.subr.bf16.mxu0 %v495
    %866 = vmatpush1.bf16.msra.mxu0 %v494
    %867 = vmatprep.subr.bf16.mxu0 %v498
    %868 = vmatpush1.bf16.msra.mxu0 %v497
    %869 = vmatprep.subr.bf16.mxu0 %v501
    %870 = vmatpush1.bf16.msra.mxu0 %v500
    %871 = vmatprep.subr.bf16.mxu0 %v504
    %872 = vmatpush1.bf16.msra.mxu0 %v503
    %873 = vmatprep.subr.bf16.mxu0 %v507
    %874 = vmatpush1.bf16.msra.mxu0 %v506
    %875 = vmatprep.subr.bf16.mxu0 %v510
    %876 = vmatpush1.bf16.msra.mxu0 %v509
    %877 = vmatprep.subr.bf16.mxu0 %v513
    %878 = vmatpush1.bf16.msra.mxu0 %v512
    %879 = vmatprep.subr.bf16.mxu0 0
    %880 = vmatpush1.bf16.msra.mxu0 0
    %881 = vmatprep.subr.bf16.mxu0 0
    %882 = vmatpush1.bf16.msra.mxu0 0
    %883 = vmatprep.subr.bf16.mxu0 0
    %884 = vmatpush1.bf16.msra.mxu0 0
    %885 = vmatprep.subr.bf16.mxu0 0
    %886 = vmatpush1.bf16.msra.mxu0 0
    %887 = vmatprep.subr.bf16.mxu0 0
    %888 = vmatpush1.bf16.msra.mxu0 0
    %889 = vmatprep.subr.bf16.mxu0 0
    %890 = vmatpush1.bf16.msra.mxu0 0
    %891 = vmatprep.subr.bf16.mxu0 0
    %892 = vmatpush1.bf16.msra.mxu0 0
    %893 = vmatprep.subr.bf16.mxu0 0
    %894 = vmatpush1.bf16.msra.mxu0 0
    %895 = vmatprep.mubr.bf16.mxu0 0
    %896 = vmatmul.mubr.bf16.gmra.mrb[0].mxu0 %v862
    %v897 = vpop.f32.mrb[0].mxu0
    %v898 = vadd.f32 0.0, %v897
    %v899 = vpop.f32.mrb[0].mxu0
    %v900 = vadd.f32 0.0, %v899
    %v901 = vpop.f32.mrb[0].mxu0
    %v902 = vpop.f32.mrb[0].mxu0
    %903 = vdwg.mxu0
    %904 = vmatprep.subr.bf16.mxu0 0
    %905 = vmatpush1.bf16.msra.mxu0 %v493
    %906 = vmatprep.subr.bf16.mxu0 0
    %907 = vmatpush1.bf16.msra.mxu0 %v496
    %908 = vmatprep.subr.bf16.mxu0 0
    %909 = vmatpush1.bf16.msra.mxu0 %v499
    %910 = vmatprep.subr.bf16.mxu0 0
    %911 = vmatpush1.bf16.msra.mxu0 %v502
    %912 = vmatprep.subr.bf16.mxu0 0
    %913 = vmatpush1.bf16.msra.mxu0 %v505
    %914 = vmatprep.subr.bf16.mxu0 0
    %915 = vmatpush1.bf16.msra.mxu0 %v508
    %916 = vmatprep.subr.bf16.mxu0 0
    %917 = vmatpush1.bf16.msra.mxu0 %v511
    %918 = vmatprep.subr.bf16.mxu0 0
    %919 = vmatpush1.bf16.msra.mxu0 %v514
    %920 = vmatprep.subr.bf16.mxu0 0
    %921 = vmatpush1.bf16.msra.mxu0 0
    %922 = vmatprep.subr.bf16.mxu0 0
    %923 = vmatpush1.bf16.msra.mxu0 0
    %924 = vmatprep.subr.bf16.mxu0 0
    %925 = vmatpush1.bf16.msra.mxu0 0
    %926 = vmatprep.subr.bf16.mxu0 0
    %927 = vmatpush1.bf16.msra.mxu0 0
    %928 = vmatprep.subr.bf16.mxu0 0
    %929 = vmatpush1.bf16.msra.mxu0 0
    %930 = vmatprep.subr.bf16.mxu0 0
    %931 = vmatpush1.bf16.msra.mxu0 0
    %932 = vmatprep.subr.bf16.mxu0 0
    %933 = vmatpush1.bf16.msra.mxu0 0
    %934 = vmatprep.subr.bf16.mxu0 0
    %935 = vmatpush1.bf16.msra.mxu0 0
    %936 = vmatprep.mubr.bf16.mxu0 0
    %937 = vmatmul.mubr.bf16.gmra.mrb[0].mxu0 %v862
    %v938 = vpop.f32.mrb[0].mxu0
    %v939 = vadd.f32 0.0, %v938
    %v940 = vpop.f32.mrb[0].mxu0
    %v941 = vpop.f32.mrb[0].mxu0
    %v942 = vpop.f32.mrb[0].mxu0
    %943 = vdwg.mxu0
    %v944 = vadd.f32 %v861, %v898
    %v945 = vmul.f32 %v944, 0.5
    %v946 = vtanh.pop %v945
    %v947 = vadd.f32 %v946, 1.0
    %v948 = vmul.f32 %v947, 0.5
    %v950 = vrot.slane %v861, 1
    %v952 = vadd.f32 %v950, %v900
    %v953 = vmul.f32 %v952, 0.5
    %v954 = vtanh.pop %v953
    %v955 = vadd.f32 %v954, 1.0
    %v956 = vmul.f32 %v955, 0.5
    %v957 = vadd.f32 %v939, %v407
    %v958 = vmul.f32 %v948, %v957
    %v959 = vrot.slane %v861, 2
    %v961 = vadd.f32 %v959, %v958
    %v962 = vtanh.pop %v961
    %v963 = vsub.f32 1.0, %v956
    %v964 = vmul.f32 %v963, %v962
    %v965 = vmul.f32 %v956, %v858
    %v966 = vadd.f32 %v964, %v965
    %967 = vst [vmem:[#allocation12 + $0x3] sm:$0x1] %v966
    %s968 = scalar_lea.vmem [#allocation3], 4
    %v969 = vld [vmem:[%s968] ss:$8 sm:$0x7]
    %v970 = vpack.c.bf16 %v966, %v966
    %971 = vmatprep.subr.bf16.mxu0 %v492
    %972 = vmatpush1.bf16.msra.mxu0 %v491
    %973 = vmatprep.subr.bf16.mxu0 %v495
    %974 = vmatpush1.bf16.msra.mxu0 %v494
    %975 = vmatprep.subr.bf16.mxu0 %v498
    %976 = vmatpush1.bf16.msra.mxu0 %v497
    %977 = vmatprep.subr.bf16.mxu0 %v501
    %978 = vmatpush1.bf16.msra.mxu0 %v500
    %979 = vmatprep.subr.bf16.mxu0 %v504
    %980 = vmatpush1.bf16.msra.mxu0 %v503
    %981 = vmatprep.subr.bf16.mxu0 %v507
    %982 = vmatpush1.bf16.msra.mxu0 %v506
    %983 = vmatprep.subr.bf16.mxu0 %v510
    %984 = vmatpush1.bf16.msra.mxu0 %v509
    %985 = vmatprep.subr.bf16.mxu0 %v513
    %986 = vmatpush1.bf16.msra.mxu0 %v512
    %987 = vmatprep.subr.bf16.mxu0 0
    %988 = vmatpush1.bf16.msra.mxu0 0
    %989 = vmatprep.subr.bf16.mxu0 0
    %990 = vmatpush1.bf16.msra.mxu0 0
    %991 = vmatprep.subr.bf16.mxu0 0
    %992 = vmatpush1.bf16.msra.mxu0 0
    %993 = vmatprep.subr.bf16.mxu0 0
    %994 = vmatpush1.bf16.msra.mxu0 0
    %995 = vmatprep.subr.bf16.mxu0 0
    %996 = vmatpush1.bf16.msra.mxu0 0
    %997 = vmatprep.subr.bf16.mxu0 0
    %998 = vmatpush1.bf16.msra.mxu0 0
    %999 = vmatprep.subr.bf16.mxu0 0
    %1000 = vmatpush1.bf16.msra.mxu0 0
    %1001 = vmatprep.subr.bf16.mxu0 0
    %1002 = vmatpush1.bf16.msra.mxu0 0
    %1003 = vmatprep.mubr.bf16.mxu0 0
    %1004 = vmatmul.mubr.bf16.gmra.mrb[0].mxu0 %v970
    %v1005 = vpop.f32.mrb[0].mxu0
    %v1006 = vadd.f32 0.0, %v1005
    %v1007 = vpop.f32.mrb[0].mxu0
    %v1008 = vadd.f32 0.0, %v1007
    %v1009 = vpop.f32.mrb[0].mxu0
    %v1010 = vpop.f32.mrb[0].mxu0
    %1011 = vdwg.mxu0
    %1012 = vmatprep.subr.bf16.mxu0 0
    %1013 = vmatpush1.bf16.msra.mxu0 %v493
    %1014 = vmatprep.subr.bf16.mxu0 0
    %1015 = vmatpush1.bf16.msra.mxu0 %v496
    %1016 = vmatprep.subr.bf16.mxu0 0
    %1017 = vmatpush1.bf16.msra.mxu0 %v499
    %1018 = vmatprep.subr.bf16.mxu0 0
    %1019 = vmatpush1.bf16.msra.mxu0 %v502
    %1020 = vmatprep.subr.bf16.mxu0 0
    %1021 = vmatpush1.bf16.msra.mxu0 %v505
    %1022 = vmatprep.subr.bf16.mxu0 0
    %1023 = vmatpush1.bf16.msra.mxu0 %v508
    %1024 = vmatprep.subr.bf16.mxu0 0
    %1025 = vmatpush1.bf16.msra.mxu0 %v511
    %1026 = vmatprep.subr.bf16.mxu0 0
    %1027 = vmatpush1.bf16.msra.mxu0 %v514
    %1028 = vmatprep.subr.bf16.mxu0 0
    %1029 = vmatpush1.bf16.msra.mxu0 0
    %1030 = vmatprep.subr.bf16.mxu0 0
    %1031 = vmatpush1.bf16.msra.mxu0 0
    %1032 = vmatprep.subr.bf16.mxu0 0
    %1033 = vmatpush1.bf16.msra.mxu0 0
    %1034 = vmatprep.subr.bf16.mxu0 0
    %1035 = vmatpush1.bf16.msra.mxu0 0
    %1036 = vmatprep.subr.bf16.mxu0 0
    %1037 = vmatpush1.bf16.msra.mxu0 0
    %1038 = vmatprep.subr.bf16.mxu0 0
    %1039 = vmatpush1.bf16.msra.mxu0 0
    %1040 = vmatprep.subr.bf16.mxu0 0
    %1041 = vmatpush1.bf16.msra.mxu0 0
    %1042 = vmatprep.subr.bf16.mxu0 0
    %1043 = vmatpush1.bf16.msra.mxu0 0
    %1044 = vmatprep.mubr.bf16.mxu0 0
    %1045 = vmatmul.mubr.bf16.gmra.mrb[0].mxu0 %v970
    %v1046 = vpop.f32.mrb[0].mxu0
    %v1047 = vadd.f32 0.0, %v1046
    %v1048 = vpop.f32.mrb[0].mxu0
    %v1049 = vpop.f32.mrb[0].mxu0
    %v1050 = vpop.f32.mrb[0].mxu0
    %1051 = vdwg.mxu0
    %v1052 = vadd.f32 %v969, %v1006
    %v1053 = vmul.f32 %v1052, 0.5
    %v1054 = vtanh.pop %v1053
    %v1055 = vadd.f32 %v1054, 1.0
    %v1056 = vmul.f32 %v1055, 0.5
    %v1058 = vrot.slane %v969, 1
    %v1060 = vadd.f32 %v1058, %v1008
    %v1061 = vmul.f32 %v1060, 0.5
    %v1062 = vtanh.pop %v1061
    %v1063 = vadd.f32 %v1062, 1.0
    %v1064 = vmul.f32 %v1063, 0.5
    %v1065 = vadd.f32 %v1047, %v407
    %v1066 = vmul.f32 %v1056, %v1065
    %v1067 = vrot.slane %v969, 2
    %v1069 = vadd.f32 %v1067, %v1066
    %v1070 = vtanh.pop %v1069
    %v1071 = vsub.f32 1.0, %v1064
    %v1072 = vmul.f32 %v1071, %v1070
    %v1073 = vmul.f32 %v1064, %v966
    %v1074 = vadd.f32 %v1072, %v1073
    %1075 = vst [vmem:[#allocation12 + $0x4] sm:$0x1] %v1074
    %s1076 = scalar_lea.vmem [#allocation3], 5
    %v1077 = vld [vmem:[%s1076] ss:$8 sm:$0x7]
    %v1078 = vpack.c.bf16 %v1074, %v1074
    %1079 = vmatprep.subr.bf16.mxu0 %v492
    %1080 = vmatpush1.bf16.msra.mxu0 %v491
    %1081 = vmatprep.subr.bf16.mxu0 %v495
    %1082 = vmatpush1.bf16.msra.mxu0 %v494
    %1083 = vmatprep.subr.bf16.mxu0 %v498
    %1084 = vmatpush1.bf16.msra.mxu0 %v497
    %1085 = vmatprep.subr.bf16.mxu0 %v501
    %1086 = vmatpush1.bf16.msra.mxu0 %v500
    %1087 = vmatprep.subr.bf16.mxu0 %v504
    %1088 = vmatpush1.bf16.msra.mxu0 %v503
    %1089 = vmatprep.subr.bf16.mxu0 %v507
    %1090 = vmatpush1.bf16.msra.mxu0 %v506
    %1091 = vmatprep.subr.bf16.mxu0 %v510
    %1092 = vmatpush1.bf16.msra.mxu0 %v509
    %1093 = vmatprep.subr.bf16.mxu0 %v513
    %1094 = vmatpush1.bf16.msra.mxu0 %v512
    %1095 = vmatprep.subr.bf16.mxu0 0
    %1096 = vmatpush1.bf16.msra.mxu0 0
    %1097 = vmatprep.subr.bf16.mxu0 0
    %1098 = vmatpush1.bf16.msra.mxu0 0
    %1099 = vmatprep.subr.bf16.mxu0 0
    %1100 = vmatpush1.bf16.msra.mxu0 0
    %1101 = vmatprep.subr.bf16.mxu0 0
    %1102 = vmatpush1.bf16.msra.mxu0 0
    %1103 = vmatprep.subr.bf16.mxu0 0
    %1104 = vmatpush1.bf16.msra.mxu0 0
    %1105 = vmatprep.subr.bf16.mxu0 0
    %1106 = vmatpush1.bf16.msra.mxu0 0
    %1107 = vmatprep.subr.bf16.mxu0 0
    %1108 = vmatpush1.bf16.msra.mxu0 0
    %1109 = vmatprep.subr.bf16.mxu0 0
    %1110 = vmatpush1.bf16.msra.mxu0 0
    %1111 = vmatprep.mubr.bf16.mxu0 0
    %1112 = vmatmul.mubr.bf16.gmra.mrb[0].mxu0 %v1078
    %v1113 = vpop.f32.mrb[0].mxu0
    %v1114 = vadd.f32 0.0, %v1113
    %v1115 = vpop.f32.mrb[0].mxu0
    %v1116 = vadd.f32 0.0, %v1115
    %v1117 = vpop.f32.mrb[0].mxu0
    %v1118 = vpop.f32.mrb[0].mxu0
    %1119 = vdwg.mxu0
    %1120 = vmatprep.subr.bf16.mxu0 0
    %1121 = vmatpush1.bf16.msra.mxu0 %v493
    %1122 = vmatprep.subr.bf16.mxu0 0
    %1123 = vmatpush1.bf16.msra.mxu0 %v496
    %1124 = vmatprep.subr.bf16.mxu0 0
    %1125 = vmatpush1.bf16.msra.mxu0 %v499
    %1126 = vmatprep.subr.bf16.mxu0 0
    %1127 = vmatpush1.bf16.msra.mxu0 %v502
    %1128 = vmatprep.subr.bf16.mxu0 0
    %1129 = vmatpush1.bf16.msra.mxu0 %v505
    %1130 = vmatprep.subr.bf16.mxu0 0
    %1131 = vmatpush1.bf16.msra.mxu0 %v508
    %1132 = vmatprep.subr.bf16.mxu0 0
    %1133 = vmatpush1.bf16.msra.mxu0 %v511
    %1134 = vmatprep.subr.bf16.mxu0 0
    %1135 = vmatpush1.bf16.msra.mxu0 %v514
    %1136 = vmatprep.subr.bf16.mxu0 0
    %1137 = vmatpush1.bf16.msra.mxu0 0
    %1138 = vmatprep.subr.bf16.mxu0 0
    %1139 = vmatpush1.bf16.msra.mxu0 0
    %1140 = vmatprep.subr.bf16.mxu0 0
    %1141 = vmatpush1.bf16.msra.mxu0 0
    %1142 = vmatprep.subr.bf16.mxu0 0
    %1143 = vmatpush1.bf16.msra.mxu0 0
    %1144 = vmatprep.subr.bf16.mxu0 0
    %1145 = vmatpush1.bf16.msra.mxu0 0
    %1146 = vmatprep.subr.bf16.mxu0 0
    %1147 = vmatpush1.bf16.msra.mxu0 0
    %1148 = vmatprep.subr.bf16.mxu0 0
    %1149 = vmatpush1.bf16.msra.mxu0 0
    %1150 = vmatprep.subr.bf16.mxu0 0
    %1151 = vmatpush1.bf16.msra.mxu0 0
    %1152 = vmatprep.mubr.bf16.mxu0 0
    %1153 = vmatmul.mubr.bf16.gmra.mrb[0].mxu0 %v1078
    %v1154 = vpop.f32.mrb[0].mxu0
    %v1155 = vadd.f32 0.0, %v1154
    %v1156 = vpop.f32.mrb[0].mxu0
    %v1157 = vpop.f32.mrb[0].mxu0
    %v1158 = vpop.f32.mrb[0].mxu0
    %1159 = vdwg.mxu0
    %v1160 = vadd.f32 %v1077, %v1114
    %v1161 = vmul.f32 %v1160, 0.5
    %v1162 = vtanh.pop %v1161
    %v1163 = vadd.f32 %v1162, 1.0
    %v1164 = vmul.f32 %v1163, 0.5
    %v1166 = vrot.slane %v1077, 1
    %v1168 = vadd.f32 %v1166, %v1116
    %v1169 = vmul.f32 %v1168, 0.5
    %v1170 = vtanh.pop %v1169
    %v1171 = vadd.f32 %v1170, 1.0
    %v1172 = vmul.f32 %v1171, 0.5
    %v1173 = vadd.f32 %v1155, %v407
    %v1174 = vmul.f32 %v1164, %v1173
    %v1175 = vrot.slane %v1077, 2
    %v1177 = vadd.f32 %v1175, %v1174
    %v1178 = vtanh.pop %v1177
    %v1179 = vsub.f32 1.0, %v1172
    %v1180 = vmul.f32 %v1179, %v1178
    %v1181 = vmul.f32 %v1172, %v1074
    %v1182 = vadd.f32 %v1180, %v1181
    %1183 = vst [vmem:[#allocation12 + $0x5] sm:$0x1] %v1182
    %s1184 = scalar_lea.vmem [#allocation3], 6
    %v1185 = vld [vmem:[%s1184] ss:$8 sm:$0x7]
    %v1186 = vpack.c.bf16 %v1182, %v1182
    %1187 = vmatprep.subr.bf16.mxu0 %v492
    %1188 = vmatpush1.bf16.msra.mxu0 %v491
    %1189 = vmatprep.subr.bf16.mxu0 %v495
    %1190 = vmatpush1.bf16.msra.mxu0 %v494
    %1191 = vmatprep.subr.bf16.mxu0 %v498
    %1192 = vmatpush1.bf16.msra.mxu0 %v497
    %1193 = vmatprep.subr.bf16.mxu0 %v501
    %1194 = vmatpush1.bf16.msra.mxu0 %v500
    %1195 = vmatprep.subr.bf16.mxu0 %v504
    %1196 = vmatpush1.bf16.msra.mxu0 %v503
    %1197 = vmatprep.subr.bf16.mxu0 %v507
    %1198 = vmatpush1.bf16.msra.mxu0 %v506
    %1199 = vmatprep.subr.bf16.mxu0 %v510
    %1200 = vmatpush1.bf16.msra.mxu0 %v509
    %1201 = vmatprep.subr.bf16.mxu0 %v513
    %1202 = vmatpush1.bf16.msra.mxu0 %v512
    %1203 = vmatprep.subr.bf16.mxu0 0
    %1204 = vmatpush1.bf16.msra.mxu0 0
    %1205 = vmatprep.subr.bf16.mxu0 0
    %1206 = vmatpush1.bf16.msra.mxu0 0
    %1207 = vmatprep.subr.bf16.mxu0 0
    %1208 = vmatpush1.bf16.msra.mxu0 0
    %1209 = vmatprep.subr.bf16.mxu0 0
    %1210 = vmatpush1.bf16.msra.mxu0 0
    %1211 = vmatprep.subr.bf16.mxu0 0
    %1212 = vmatpush1.bf16.msra.mxu0 0
    %1213 = vmatprep.subr.bf16.mxu0 0
    %1214 = vmatpush1.bf16.msra.mxu0 0
    %1215 = vmatprep.subr.bf16.mxu0 0
    %1216 = vmatpush1.bf16.msra.mxu0 0
    %1217 = vmatprep.subr.bf16.mxu0 0
    %1218 = vmatpush1.bf16.msra.mxu0 0
    %1219 = vmatprep.mubr.bf16.mxu0 0
    %1220 = vmatmul.mubr.bf16.gmra.mrb[0].mxu0 %v1186
    %v1221 = vpop.f32.mrb[0].mxu0
    %v1222 = vadd.f32 0.0, %v1221
    %v1223 = vpop.f32.mrb[0].mxu0
    %v1224 = vadd.f32 0.0, %v1223
    %v1225 = vpop.f32.mrb[0].mxu0
    %v1226 = vpop.f32.mrb[0].mxu0
    %1227 = vdwg.mxu0
    %1228 = vmatprep.subr.bf16.mxu0 0
    %1229 = vmatpush1.bf16.msra.mxu0 %v493
    %1230 = vmatprep.subr.bf16.mxu0 0
    %1231 = vmatpush1.bf16.msra.mxu0 %v496
    %1232 = vmatprep.subr.bf16.mxu0 0
    %1233 = vmatpush1.bf16.msra.mxu0 %v499
    %1234 = vmatprep.subr.bf16.mxu0 0
    %1235 = vmatpush1.bf16.msra.mxu0 %v502
    %1236 = vmatprep.subr.bf16.mxu0 0
    %1237 = vmatpush1.bf16.msra.mxu0 %v505
    %1238 = vmatprep.subr.bf16.mxu0 0
    %1239 = vmatpush1.bf16.msra.mxu0 %v508
    %1240 = vmatprep.subr.bf16.mxu0 0
    %1241 = vmatpush1.bf16.msra.mxu0 %v511
    %1242 = vmatprep.subr.bf16.mxu0 0
    %1243 = vmatpush1.bf16.msra.mxu0 %v514
    %1244 = vmatprep.subr.bf16.mxu0 0
    %1245 = vmatpush1.bf16.msra.mxu0 0
    %1246 = vmatprep.subr.bf16.mxu0 0
    %1247 = vmatpush1.bf16.msra.mxu0 0
    %1248 = vmatprep.subr.bf16.mxu0 0
    %1249 = vmatpush1.bf16.msra.mxu0 0
    %1250 = vmatprep.subr.bf16.mxu0 0
    %1251 = vmatpush1.bf16.msra.mxu0 0
    %1252 = vmatprep.subr.bf16.mxu0 0
    %1253 = vmatpush1.bf16.msra.mxu0 0
    %1254 = vmatprep.subr.bf16.mxu0 0
    %1255 = vmatpush1.bf16.msra.mxu0 0
    %1256 = vmatprep.subr.bf16.mxu0 0
    %1257 = vmatpush1.bf16.msra.mxu0 0
    %1258 = vmatprep.subr.bf16.mxu0 0
    %1259 = vmatpush1.bf16.msra.mxu0 0
    %1260 = vmatprep.mubr.bf16.mxu0 0
    %1261 = vmatmul.mubr.bf16.gmra.mrb[0].mxu0 %v1186
    %v1262 = vpop.f32.mrb[0].mxu0
    %v1263 = vadd.f32 0.0, %v1262
    %v1264 = vpop.f32.mrb[0].mxu0
    %v1265 = vpop.f32.mrb[0].mxu0
    %v1266 = vpop.f32.mrb[0].mxu0
    %1267 = vdwg.mxu0
    %v1268 = vadd.f32 %v1185, %v1222
    %v1269 = vmul.f32 %v1268, 0.5
    %v1270 = vtanh.pop %v1269
    %v1271 = vadd.f32 %v1270, 1.0
    %v1272 = vmul.f32 %v1271, 0.5
    %v1274 = vrot.slane %v1185, 1
    %v1276 = vadd.f32 %v1274, %v1224
    %v1277 = vmul.f32 %v1276, 0.5
    %v1278 = vtanh.pop %v1277
    %v1279 = vadd.f32 %v1278, 1.0
    %v1280 = vmul.f32 %v1279, 0.5
    %v1281 = vadd.f32 %v1263, %v407
    %v1282 = vmul.f32 %v1272, %v1281
    %v1283 = vrot.slane %v1185, 2
    %v1285 = vadd.f32 %v1283, %v1282
    %v1286 = vtanh.pop %v1285
    %v1287 = vsub.f32 1.0, %v1280
    %v1288 = vmul.f32 %v1287, %v1286
    %v1289 = vmul.f32 %v1280, %v1182
    %v1290 = vadd.f32 %v1288, %v1289
    %1291 = vst [vmem:[#allocation12 + $0x6] sm:$0x1] %v1290
    %s1292 = scalar_lea.vmem [#allocation3], 7
    %v1293 = vld [vmem:[%s1292] ss:$8 sm:$0x7]
    %v1294 = vpack.c.bf16 %v1290, %v1290
    %1295 = vmatprep.subr.bf16.mxu0 %v492
    %1296 = vmatpush1.bf16.msra.mxu0 %v491
    %1297 = vmatprep.subr.bf16.mxu0 %v495
    %1298 = vmatpush1.bf16.msra.mxu0 %v494
    %1299 = vmatprep.subr.bf16.mxu0 %v498
    %1300 = vmatpush1.bf16.msra.mxu0 %v497
    %1301 = vmatprep.subr.bf16.mxu0 %v501
    %1302 = vmatpush1.bf16.msra.mxu0 %v500
    %1303 = vmatprep.subr.bf16.mxu0 %v504
    %1304 = vmatpush1.bf16.msra.mxu0 %v503
    %1305 = vmatprep.subr.bf16.mxu0 %v507
    %1306 = vmatpush1.bf16.msra.mxu0 %v506
    %1307 = vmatprep.subr.bf16.mxu0 %v510
    %1308 = vmatpush1.bf16.msra.mxu0 %v509
    %1309 = vmatprep.subr.bf16.mxu0 %v513
    %1310 = vmatpush1.bf16.msra.mxu0 %v512
    %1311 = vmatprep.subr.bf16.mxu0 0
    %1312 = vmatpush1.bf16.msra.mxu0 0
    %1313 = vmatprep.subr.bf16.mxu0 0
    %1314 = vmatpush1.bf16.msra.mxu0 0
    %1315 = vmatprep.subr.bf16.mxu0 0
    %1316 = vmatpush1.bf16.msra.mxu0 0
    %1317 = vmatprep.subr.bf16.mxu0 0
    %1318 = vmatpush1.bf16.msra.mxu0 0
    %1319 = vmatprep.subr.bf16.mxu0 0
    %1320 = vmatpush1.bf16.msra.mxu0 0
    %1321 = vmatprep.subr.bf16.mxu0 0
    %1322 = vmatpush1.bf16.msra.mxu0 0
    %1323 = vmatprep.subr.bf16.mxu0 0
    %1324 = vmatpush1.bf16.msra.mxu0 0
    %1325 = vmatprep.subr.bf16.mxu0 0
    %1326 = vmatpush1.bf16.msra.mxu0 0
    %1327 = vmatprep.mubr.bf16.mxu0 0
    %1328 = vmatmul.mubr.bf16.gmra.mrb[0].mxu0 %v1294
    %v1329 = vpop.f32.mrb[0].mxu0
    %v1330 = vadd.f32 0.0, %v1329
    %v1331 = vpop.f32.mrb[0].mxu0
    %v1332 = vadd.f32 0.0, %v1331
    %v1333 = vpop.f32.mrb[0].mxu0
    %v1334 = vpop.f32.mrb[0].mxu0
    %1335 = vdwg.mxu0
    %1336 = vmatprep.subr.bf16.mxu0 0
    %1337 = vmatpush1.bf16.msra.mxu0 %v493
    %1338 = vmatprep.subr.bf16.mxu0 0
    %1339 = vmatpush1.bf16.msra.mxu0 %v496
    %1340 = vmatprep.subr.bf16.mxu0 0
    %1341 = vmatpush1.bf16.msra.mxu0 %v499
    %1342 = vmatprep.subr.bf16.mxu0 0
    %1343 = vmatpush1.bf16.msra.mxu0 %v502
    %1344 = vmatprep.subr.bf16.mxu0 0
    %1345 = vmatpush1.bf16.msra.mxu0 %v505
    %1346 = vmatprep.subr.bf16.mxu0 0
    %1347 = vmatpush1.bf16.msra.mxu0 %v508
    %1348 = vmatprep.subr.bf16.mxu0 0
    %1349 = vmatpush1.bf16.msra.mxu0 %v511
    %1350 = vmatprep.subr.bf16.mxu0 0
    %1351 = vmatpush1.bf16.msra.mxu0 %v514
    %1352 = vmatprep.subr.bf16.mxu0 0
    %1353 = vmatpush1.bf16.msra.mxu0 0
    %1354 = vmatprep.subr.bf16.mxu0 0
    %1355 = vmatpush1.bf16.msra.mxu0 0
    %1356 = vmatprep.subr.bf16.mxu0 0
    %1357 = vmatpush1.bf16.msra.mxu0 0
    %1358 = vmatprep.subr.bf16.mxu0 0
    %1359 = vmatpush1.bf16.msra.mxu0 0
    %1360 = vmatprep.subr.bf16.mxu0 0
    %1361 = vmatpush1.bf16.msra.mxu0 0
    %1362 = vmatprep.subr.bf16.mxu0 0
    %1363 = vmatpush1.bf16.msra.mxu0 0
    %1364 = vmatprep.subr.bf16.mxu0 0
    %1365 = vmatpush1.bf16.msra.mxu0 0
    %1366 = vmatprep.subr.bf16.mxu0 0
    %1367 = vmatpush1.bf16.msra.mxu0 0
    %1368 = vmatprep.mubr.bf16.mxu0 0
    %1369 = vmatmul.mubr.bf16.gmra.mrb[0].mxu0 %v1294
    %v1370 = vpop.f32.mrb[0].mxu0
    %v1371 = vadd.f32 0.0, %v1370
    %v1372 = vpop.f32.mrb[0].mxu0
    %v1373 = vpop.f32.mrb[0].mxu0
    %v1374 = vpop.f32.mrb[0].mxu0
    %1375 = vdwg.mxu0
    %v1376 = vadd.f32 %v1293, %v1330
    %v1377 = vmul.f32 %v1376, 0.5
    %v1378 = vtanh.pop %v1377
    %v1379 = vadd.f32 %v1378, 1.0
    %v1380 = vmul.f32 %v1379, 0.5
    %v1382 = vrot.slane %v1293, 1
    %v1384 = vadd.f32 %v1382, %v1332
    %v1385 = vmul.f32 %v1384, 0.5
    %v1386 = vtanh.pop %v1385
    %v1387 = vadd.f32 %v1386, 1.0
    %v1388 = vmul.f32 %v1387, 0.5
    %v1389 = vadd.f32 %v1371, %v407
    %v1390 = vmul.f32 %v1380, %v1389
    %v1391 = vrot.slane %v1293, 2
    %v1393 = vadd.f32 %v1391, %v1390
    %v1394 = vtanh.pop %v1393
    %v1395 = vsub.f32 1.0, %v1388
    %v1396 = vmul.f32 %v1395, %v1394
    %v1397 = vmul.f32 %v1388, %v1290
    %v1398 = vadd.f32 %v1396, %v1397
    %1399 = vst [vmem:[#allocation12 + $0x7] sm:$0x1] %v1398
    // Predicated region
    $region46: #{tpu_custom_call.1} parent=1 // pred_check
      _
    $region47: #{tpu_custom_call.1} parent=1 // pred_check_branch
      %1401 = sbr.rel (0) target = $region49
    $region48: #{tpu_custom_call.1} parent=1 // pred_region
      %s1403 = ssub.s32 128, 128
      %1404 = vsyncadd [#allocation6], %s1403
      %s1406 = sshll.u32 [#allocation12], 4
      %s1407 = int_to_ptr.vmem [resolvable:$true] %s1406
      %1409 = dma.vmem_to_hbm [thread:$0]  %s1407, 128, %s7, [#allocation6]
    $region49: #{tpu_custom_call.1} parent=1 // pred_fallthru
      _
    // Predicated region
    $region50: #{tpu_custom_call.1} parent=1 // pred_check
      _
    $region51: #{tpu_custom_call.1} parent=1 // pred_check_branch
      %1411 = sbr.rel (0) target = $region53
    $region52: #{tpu_custom_call.1} parent=1 // pred_region
      %1412 = dma.done [#allocation6], 128
    $region53: #{tpu_custom_call.1} parent=1 // pred_fallthru
      _
    %1413 = vsyncpa [#allocation5], 1
    %1414 = vsyncpa [#allocation10], 1
    %1415 = vsyncpa [#allocation6], 1
    %1416 = vsyncpa [#allocation7], 1

</llo_original>
